<compile_context>
chip_gen: v7x
topology: tpu7x:2x2x1
jax: 0.10.0
libtpu: 0.0.40
codegen_flags: <defaults>
</compile_context>

<pallas_src>
import functools

import jax
import jax.numpy as jnp
from jax.experimental import pallas as pl
from jax.experimental.pallas import tpu as pltpu


def _round_up(x, m):
    return (x + m - 1) // m * m


def gan_instance_kernel(x_ref, w1t_ref, w2t_ref, w3t_ref, bias_ref, out_ref):
    d_h = w1t_ref.shape[1]
    d_out = w3t_ref.shape[1]

    # Static lane slices of the single concatenated bias row (f32).
    b1 = bias_ref[:, 0:d_h]
    b2 = bias_ref[:, d_h:2 * d_h]
    b3 = bias_ref[:, 2 * d_h:2 * d_h + d_out]

    x = x_ref[...].astype(jnp.bfloat16)
    h1 = jnp.dot(x, w1t_ref[...], preferred_element_type=jnp.float32) + b1
    h2 = jnp.dot(h1.astype(jnp.bfloat16), w2t_ref[...],
                 preferred_element_type=jnp.float32) + b2
    h3 = jnp.dot(h2.astype(jnp.bfloat16), w3t_ref[...],
                 preferred_element_type=jnp.float32) + b3
    out_ref[...] = h3.astype(out_ref.dtype)


@functools.partial(jax.jit, static_argnames=("tb",))
def gan_instance_forward(cat_feat, prepared, *, tb=256):
    """cat_feat: [B, 2*head_feat_len] f32.  prepared: output of prepare_params."""
    w1t, w2t, w3t = prepared["w1t"], prepared["w2t"], prepared["w3t"]
    bias = prepared["bias"]                       # [1, d_h + d_h + d_out] f32
    B, d_in = cat_feat.shape
    d_h = w1t.shape[1]
    d_out = w3t.shape[1]

    # Batch tile (sublane-aligned); pad B up to a tile multiple only if needed.
    TB = min(tb, _round_up(B, 8))
    Bp = _round_up(B, TB)
    x = cat_feat if Bp == B else jnp.pad(cat_feat, ((0, Bp - B), (0, 0)))
    grid = (Bp // TB,)

    flops = 2 * Bp * (d_in * d_h + d_h * d_h + d_h * d_out)
    bytes_accessed = ((w1t.size + w2t.size + w3t.size) * w1t.dtype.itemsize
                      + bias.size * 4 + Bp * d_in * 4 + Bp * d_out * 4)

    out = pl.pallas_call(
        gan_instance_kernel,
        out_shape=jax.ShapeDtypeStruct((Bp, d_out), cat_feat.dtype),
        grid=grid,
        in_specs=[
            pl.BlockSpec((TB, d_in), lambda i: (i, 0)),      # activation tile
            pl.BlockSpec((d_in, d_h), lambda i: (0, 0)),     # weights: constant
            pl.BlockSpec((d_h, d_h), lambda i: (0, 0)),      #  index_map -> DMA'd
            pl.BlockSpec((d_h, d_out), lambda i: (0, 0)),    #  once, VMEM-resident
            pl.BlockSpec((1, bias.shape[1]), lambda i: (0, 0)),
        ],
        out_specs=pl.BlockSpec((TB, d_out), lambda i: (i, 0)),
        compiler_params=pltpu.CompilerParams(
            dimension_semantics=("parallel",)),
        cost_estimate=pl.CostEstimate(
            flops=flops, transcendentals=0, bytes_accessed=bytes_accessed),
    )(x, w1t, w2t, w3t, bias)
    return out[:B]


def prepare_params(params):
    """One-time glue (amortized over all forward calls):
    transpose nn.Linear weights to [in, out], cast to bf16, concat biases."""
    w1t = params["fc1_w"].T.astype(jnp.bfloat16)
    w2t = params["fc2_w"].T.astype(jnp.bfloat16)
    w3t = params["fc3_w"].T.astype(jnp.bfloat16)
    bias = jnp.concatenate(
        [params["fc1_b"], params["fc2_b"], params["fc3_b"]])[None, :].astype(jnp.float32)
    return {"w1t": w1t, "w2t": w2t, "w3t": w3t, "bias": bias}


def init_params(key, class_num, head_feat_len):
    """Deterministic synthetic init with nn.Linear-style shapes/layout."""
    d_in = 2 * head_feat_len
    d_h = 10 * class_num
    d_out = 2 * class_num
    ks = jax.random.split(key, 6)

    def lin(kw, kb, out_f, in_f):
        bound = 1.0 / jnp.sqrt(in_f)   # PyTorch default Uniform(-1/sqrt(in), 1/sqrt(in))
        w = jax.random.uniform(kw, (out_f, in_f), jnp.float32, -bound, bound)
        b = jax.random.uniform(kb, (out_f,), jnp.float32, -bound, bound)
        return w, b

    w1, b1 = lin(ks[0], ks[1], d_h, d_in)
    w2, b2 = lin(ks[2], ks[3], d_h, d_h)
    w3, b3 = lin(ks[4], ks[5], d_out, d_h)
    return {"fc1_w": w1, "fc1_b": b1,
            "fc2_w": w2, "fc2_b": b2,
            "fc3_w": w3, "fc3_b": b3}


if __name__ == "__main__":
    # Small shapes consistent with the module:
    #   class_num=64, head_feat_len=64  ->  in=128, hidden=640, out=128
    class_num = 64
    head_feat_len = 64
    batch = 32

    key = jax.random.PRNGKey(0)
    k_x, k_p = jax.random.split(key)
    cat_feat = jax.random.normal(k_x, (batch, 2 * head_feat_len), jnp.float32)
    params = init_params(k_p, class_num, head_feat_len)
    prepared = prepare_params(params)   # one-time packaging, reused every call

    # tb=8 -> grid=(4,) batch tiles: exercises the pipelined, weight-resident path.
    out = gan_instance_forward(cat_feat, prepared, tb=8)
    out = jax.block_until_ready(out)

    d_h = prepared["w1t"].shape[1]
    d_out = prepared["w3t"].shape[1]
    b1 = prepared["bias"][:, :d_h]
    b2 = prepared["bias"][:, d_h:2 * d_h]
    b3 = prepared["bias"][:, 2 * d_h:]

    # Reference 1: same bf16 weights / f32 accumulation in pure JAX (tight check).
    def ref_bf16(x, p):
        h = jnp.dot(x.astype(jnp.bfloat16), p["w1t"],
                    preferred_element_type=jnp.float32) + b1
        h = jnp.dot(h.astype(jnp.bfloat16), p["w2t"],
                    preferred_element_type=jnp.float32) + b2
        h = jnp.dot(h.astype(jnp.bfloat16), p["w3t"],
                    preferred_element_type=jnp.float32) + b3
        return h

    expected = ref_bf16(cat_feat, prepared)
    assert out.shape == (batch, 2 * class_num)
    assert jnp.allclose(out, expected, atol=1e-2, rtol=1e-2), \
        float(jnp.max(jnp.abs(out - expected)))

    # Reference 2: original full-f32 nn.Linear math (loose: bf16 weight storage).
    def ref_f32(x, p):
        x = x @ p["fc1_w"].T + p["fc1_b"]
        x = x @ p["fc2_w"].T + p["fc2_b"]
        x = x @ p["fc3_w"].T + p["fc3_b"]
        return x

    assert jnp.allclose(out, ref_f32(cat_feat, params), atol=1e-1, rtol=1e-1)

    print("KERNEL_OK")
</pallas_src>

<mosaic_0001>
module attributes {stable_mosaic.version = 11 : i64} {
  func.func @gan_instance_kernel(%arg0: i32, %arg1: memref<8x128xf32, #tpu.memory_space<vmem>>, %arg2: memref<128x640xbf16, #tpu.memory_space<vmem>>, %arg3: memref<640x640xbf16, #tpu.memory_space<vmem>>, %arg4: memref<640x128xbf16, #tpu.memory_space<vmem>>, %arg5: memref<1x1408xf32, #tpu.memory_space<vmem>>, %arg6: memref<8x128xf32, #tpu.memory_space<vmem>>) attributes {dimension_semantics = [#tpu.dimension_semantics<parallel>], iteration_bounds = array<i64: 4>, scalar_prefetch = 0 : i64, scratch_operands = 0 : i64, tpu.core_type = #tpu.core_type<tc>, window_params = [{transform_indices = @transform_0, window_bounds = array<i64: 8, 128>}, {pipeline_mode = #tpu.pipeline_mode<synchronous>, transform_indices = @transform_1, window_bounds = array<i64: 128, 640>}, {pipeline_mode = #tpu.pipeline_mode<synchronous>, transform_indices = @transform_2, window_bounds = array<i64: 640, 640>}, {pipeline_mode = #tpu.pipeline_mode<synchronous>, transform_indices = @transform_3, window_bounds = array<i64: 640, 128>}, {pipeline_mode = #tpu.pipeline_mode<synchronous>, transform_indices = @transform_4, window_bounds = array<i64: 1, 1408>}, {transform_indices = @transform_5, window_bounds = array<i64: 8, 128>}]} {
    %c0 = arith.constant 0 : index
    %c0_0 = arith.constant 0 : index
    %0 = vector.load %arg5[%c0, %c0_0] : memref<1x1408xf32, #tpu.memory_space<vmem>>, vector<1x640xf32>
    %c0_1 = arith.constant 0 : index
    %c640 = arith.constant 640 : index
    %1 = vector.load %arg5[%c0_1, %c640] : memref<1x1408xf32, #tpu.memory_space<vmem>>, vector<1x640xf32>
    %c0_2 = arith.constant 0 : index
    %c1280 = arith.constant 1280 : index
    %2 = vector.load %arg5[%c0_2, %c1280] : memref<1x1408xf32, #tpu.memory_space<vmem>>, vector<1x128xf32>
    %c0_3 = arith.constant 0 : index
    %c0_4 = arith.constant 0 : index
    %3 = vector.load %arg1[%c0_3, %c0_4] : memref<8x128xf32, #tpu.memory_space<vmem>>, vector<8x128xf32>
    %4 = arith.truncf %3 : vector<8x128xf32> to vector<8x128xbf16>
    %c0_5 = arith.constant 0 : index
    %c0_6 = arith.constant 0 : index
    %5 = vector.load %arg2[%c0_5, %c0_6] : memref<128x640xbf16, #tpu.memory_space<vmem>>, vector<128x640xbf16>
    %cst = arith.constant dense<0.000000e+00> : vector<8x640xf32>
    %6 = tpu.matmul %4, %5, %cst {dimension_numbers = #tpu.dot_dimension_numbers<[1], [0], [0], [1], [0, 0, 1, 1], [], []>} : vector<8x128xbf16>, vector<128x640xbf16>, vector<8x640xf32> -> vector<8x640xf32>
    %7 = vector.broadcast %0 : vector<1x640xf32> to vector<8x640xf32>
    %8 = arith.addf %6, %7 : vector<8x640xf32>
    %9 = arith.truncf %8 : vector<8x640xf32> to vector<8x640xbf16>
    %c0_7 = arith.constant 0 : index
    %c0_8 = arith.constant 0 : index
    %10 = vector.load %arg3[%c0_7, %c0_8] : memref<640x640xbf16, #tpu.memory_space<vmem>>, vector<640x640xbf16>
    %cst_9 = arith.constant dense<0.000000e+00> : vector<8x640xf32>
    %11 = tpu.matmul %9, %10, %cst_9 {dimension_numbers = #tpu.dot_dimension_numbers<[1], [0], [0], [1], [0, 0, 1, 1], [], []>} : vector<8x640xbf16>, vector<640x640xbf16>, vector<8x640xf32> -> vector<8x640xf32>
    %12 = vector.broadcast %1 : vector<1x640xf32> to vector<8x640xf32>
    %13 = arith.addf %11, %12 : vector<8x640xf32>
    %14 = arith.truncf %13 : vector<8x640xf32> to vector<8x640xbf16>
    %c0_10 = arith.constant 0 : index
    %c0_11 = arith.constant 0 : index
    %15 = vector.load %arg4[%c0_10, %c0_11] : memref<640x128xbf16, #tpu.memory_space<vmem>>, vector<640x128xbf16>
    %cst_12 = arith.constant dense<0.000000e+00> : vector<8x128xf32>
    %16 = tpu.matmul %14, %15, %cst_12 {dimension_numbers = #tpu.dot_dimension_numbers<[1], [0], [0], [1], [0, 0, 1, 1], [], []>} : vector<8x640xbf16>, vector<640x128xbf16>, vector<8x128xf32> -> vector<8x128xf32>
    %17 = vector.broadcast %2 : vector<1x128xf32> to vector<8x128xf32>
    %18 = arith.addf %16, %17 : vector<8x128xf32>
    %c0_13 = arith.constant 0 : index
    %c0_14 = arith.constant 0 : index
    %19 = vector.load %arg6[%c0_13, %c0_14] : memref<8x128xf32, #tpu.memory_space<vmem>>, vector<8x128xf32>
    tpu.vector_store %arg6[%c0_13, %c0_14], %18 {strides = array<i32>} : memref<8x128xf32, #tpu.memory_space<vmem>>, vector<8x128xf32>,
    return
  }
  func.func @transform_0(%arg0: i32) -> (i32, i32) {
    %c0_i32 = arith.constant 0 : i32
    %c0_i32_0 = arith.constant 0 : i32
    return %arg0, %c0_i32 : i32, i32
  }
  func.func @transform_1(%arg0: i32) -> (i32, i32) {
    %c0_i32 = arith.constant 0 : i32
    %c0_i32_0 = arith.constant 0 : i32
    %c0_i32_1 = arith.constant 0 : i32
    return %c0_i32, %c0_i32_0 : i32, i32
  }
  func.func @transform_2(%arg0: i32) -> (i32, i32) {
    %c0_i32 = arith.constant 0 : i32
    %c0_i32_0 = arith.constant 0 : i32
    %c0_i32_1 = arith.constant 0 : i32
    return %c0_i32, %c0_i32_0 : i32, i32
  }
  func.func @transform_3(%arg0: i32) -> (i32, i32) {
    %c0_i32 = arith.constant 0 : i32
    %c0_i32_0 = arith.constant 0 : i32
    %c0_i32_1 = arith.constant 0 : i32
    return %c0_i32, %c0_i32_0 : i32, i32
  }
  func.func @transform_4(%arg0: i32) -> (i32, i32) {
    %c0_i32 = arith.constant 0 : i32
    %c0_i32_0 = arith.constant 0 : i32
    %c0_i32_1 = arith.constant 0 : i32
    return %c0_i32, %c0_i32_0 : i32, i32
  }
  func.func @transform_5(%arg0: i32) -> (i32, i32) {
    %c0_i32 = arith.constant 0 : i32
    %c0_i32_0 = arith.constant 0 : i32
    return %arg0, %c0_i32 : i32, i32
  }
}

</mosaic_0001>

<llo_original>
// kernel: gan_instance_forward.1
$region0: #{gan_instance_forward.1}
  #allocation0 [shape = 'u32[]', space=smem, size = 0x4, offset = 0x4, fixed_abs, tag = 'smem constant byte address 0x4 - core index']
  #allocation1 [shape = 'u32[144,128]{1,0:T(1,128)}', space=vmem, size = 0x12000, scoped, tag = 'internal scratch']
  %s0 = inlined_call_operand.hbm [shape: f32[32,128], index: 0, kind: input, shape index: {}]
  %s1 = inlined_call_operand.hbm [shape: bf16[128,640], index: 1, kind: input, shape index: {}]
  %s2 = inlined_call_operand.hbm [shape: bf16[640,640], index: 2, kind: input, shape index: {}]
  %s3 = inlined_call_operand.hbm [shape: bf16[640,128], index: 3, kind: input, shape index: {}]
  %s4 = inlined_call_operand.hbm [shape: f32[1,1408], index: 4, kind: input, shape index: {}]
  %s5 = inlined_call_operand.hbm [shape: f32[32,128], index: 5, kind: output, shape index: {}]
  %s6 = sld [smem:[#allocation0]]
  $region73: #{gan_instance_forward.1} parent=0
    _
  %s8 = ssub.s32 1, %s6
  %s9 = scalar_select 0, %s8, %s6
  $region1: #{gan_instance_forward.1} parent=0
    #allocation2 [shape = 'u8[8192]{0}', space=vmem, size = 0x2000, scoped, tag = 'input window, operand 0']
    #allocation3 [shape = 's32[2]{0}', space=sflag, size = 0x8, scoped, tag = 'scoped memory for gan_instance_forward.1']
    #allocation4 [shape = 's32[2]{0}', space=sflag, size = 0x8, scoped, tag = 'scoped memory for gan_instance_forward.1']
    #allocation5 [shape = 'u8[163840]{0}', space=vmem, size = 0x28000, scoped, tag = 'input window, operand 1, single buffered']
    #allocation6 [shape = 's32[1]{0}', space=sflag, size = 0x4, scoped, tag = 'scoped memory for gan_instance_forward.1']
    #allocation7 [shape = 'u8[819200]{0}', space=vmem, size = 0xc8000, scoped, tag = 'input window, operand 2, single buffered']
    #allocation8 [shape = 'u8[163840]{0}', space=vmem, size = 0x28000, scoped, tag = 'input window, operand 3, single buffered']
    #allocation9 [shape = 's32[1]{0}', space=sflag, size = 0x4, scoped, tag = 'scoped memory for gan_instance_forward.1']
    #allocation10 [shape = 'u8[5632]{0}', space=vmem, size = 0x1800, scoped, tag = 'input window, operand 4, single buffered']
    #allocation11 [shape = 'u8[8192]{0}', space=vmem, size = 0x2000, scoped, tag = 'output window, operand 0']
    %10 = vsyncpa [#allocation3], 0
    %s11 = scalar_lea.sflag [#allocation3], 1
    %12 = vsyncpa %s11, 0
    %13 = vsyncpa [#allocation6], 0
    %14 = vsyncpa [#allocation9], 0
    %15 = vsyncpa [#allocation4], 0
    %s16 = scalar_lea.sflag [#allocation4], 1
    %17 = vsyncpa %s16, 0
    loop: start=0, step=1, limit=6
    $region2: #{gan_instance_forward.1} parent=1 // loop_pre_header
      _
    $region3: #{gan_instance_forward.1} parent=1 // loop_header
      %s19 = sphi 0, %s23
      %p20 = scmp.ge.s32.totalorder %s19, 6
      %s29 = sphi 0, %s31
      %s32 = sphi 0, %s29
      %s33 = sphi 0, %s32
      %s49 = sphi 0, %s33
      %s53 = sphi 0, %s53
      %s55 = sphi 0, %s53
      %s56 = sphi 0, %s55
      %s70 = sphi 0, %s56
      %s74 = sphi 0, %s74
      %s76 = sphi 0, %s74
      %s77 = sphi 0, %s76
      %s91 = sphi 0, %s77
      %s95 = sphi 0, %s95
      %s97 = sphi 0, %s95
      %s98 = sphi 0, %s97
      %s112 = sphi 0, %s98
      %s116 = sphi 0, %s116
      %s118 = sphi 0, %s116
      %s119 = sphi 0, %s118
      %s133 = sphi 0, %s119
      %s139 = sphi 0, %s141
      %s142 = sphi 0, %s139
      %s143 = sphi 0, %s142
      %s159 = sphi 0, %s143
    $region4: #{gan_instance_forward.1} parent=1 // loop_header_branch
      %22 = sbr.rel (%p20) target = $region8
    $region5: #{gan_instance_forward.1} parent=1 // loop_body
      %s24 = ssub.s32 %s19, 1
      %s25 = ssub.s32 %s19, 2
      %s26 = sadd.s32 %s19, 1
      %s27 = ssub.s32 %s19, %s26
      %p28 = scmp.eq.s32.totalorder %s27, 0
      %s30 = sadd.s32 %s29, 1
      %s31 = scalar_select %p28, %s29, %s30
      %p34 = pneg %p28
      %p35 = scmp.eq.s32.totalorder %s19, 3
      %p36 = por %p34, %p35
      %p37 = scmp.ne.s32.totalorder %s29, %s32
      %p38 = scmp.eq.s32.totalorder %s19, 0
      %p39 = por %p37, %p38
      %p40 = scmp.ne.s32.totalorder %s29, %s32
      %p41 = scmp.eq.s32.totalorder %s24, 3
      %p42 = por %p40, %p41
      %p43 = scmp.ne.s32.totalorder %s32, %s33
      %p44 = scmp.eq.s32.totalorder %s24, 0
      %p45 = por %p43, %p44
      %p46 = scmp.ne.s32.totalorder %s32, %s33
      %p47 = scmp.eq.s32.totalorder %s25, 3
      %p48 = por %p46, %p47
      %p50 = scmp.ne.s32.totalorder %s33, %s49
      %p51 = scmp.eq.s32.totalorder %s25, 0
      %p52 = por %p50, %p51
      %s54 = sadd.s32 %s53, 1
      %p57 = scmp.eq.s32.totalorder %s19, 3
      %p58 = scmp.ne.s32.totalorder %s53, %s55
      %p59 = scmp.eq.s32.totalorder %s19, 0
      %p60 = por %p58, %p59
      %p61 = scmp.ne.s32.totalorder %s53, %s55
      %p62 = scmp.eq.s32.totalorder %s24, 3
      %p63 = por %p61, %p62
      %p64 = scmp.ne.s32.totalorder %s55, %s56
      %p65 = scmp.eq.s32.totalorder %s24, 0
      %p66 = por %p64, %p65
      %p67 = scmp.ne.s32.totalorder %s55, %s56
      %p68 = scmp.eq.s32.totalorder %s25, 3
      %p69 = por %p67, %p68
      %p71 = scmp.ne.s32.totalorder %s56, %s70
      %p72 = scmp.eq.s32.totalorder %s25, 0
      %p73 = por %p71, %p72
      %s75 = sadd.s32 %s74, 1
      %p78 = scmp.eq.s32.totalorder %s19, 3
      %p79 = scmp.ne.s32.totalorder %s74, %s76
      %p80 = scmp.eq.s32.totalorder %s19, 0
      %p81 = por %p79, %p80
      %p82 = scmp.ne.s32.totalorder %s74, %s76
      %p83 = scmp.eq.s32.totalorder %s24, 3
      %p84 = por %p82, %p83
      %p85 = scmp.ne.s32.totalorder %s76, %s77
      %p86 = scmp.eq.s32.totalorder %s24, 0
      %p87 = por %p85, %p86
      %p88 = scmp.ne.s32.totalorder %s76, %s77
      %p89 = scmp.eq.s32.totalorder %s25, 3
      %p90 = por %p88, %p89
      %p92 = scmp.ne.s32.totalorder %s77, %s91
      %p93 = scmp.eq.s32.totalorder %s25, 0
      %p94 = por %p92, %p93
      %s96 = sadd.s32 %s95, 1
      %p99 = scmp.eq.s32.totalorder %s19, 3
      %p100 = scmp.ne.s32.totalorder %s95, %s97
      %p101 = scmp.eq.s32.totalorder %s19, 0
      %p102 = por %p100, %p101
      %p103 = scmp.ne.s32.totalorder %s95, %s97
      %p104 = scmp.eq.s32.totalorder %s24, 3
      %p105 = por %p103, %p104
      %p106 = scmp.ne.s32.totalorder %s97, %s98
      %p107 = scmp.eq.s32.totalorder %s24, 0
      %p108 = por %p106, %p107
      %p109 = scmp.ne.s32.totalorder %s97, %s98
      %p110 = scmp.eq.s32.totalorder %s25, 3
      %p111 = por %p109, %p110
      %p113 = scmp.ne.s32.totalorder %s98, %s112
      %p114 = scmp.eq.s32.totalorder %s25, 0
      %p115 = por %p113, %p114
      %s117 = sadd.s32 %s116, 1
      %p120 = scmp.eq.s32.totalorder %s19, 3
      %p121 = scmp.ne.s32.totalorder %s116, %s118
      %p122 = scmp.eq.s32.totalorder %s19, 0
      %p123 = por %p121, %p122
      %p124 = scmp.ne.s32.totalorder %s116, %s118
      %p125 = scmp.eq.s32.totalorder %s24, 3
      %p126 = por %p124, %p125
      %p127 = scmp.ne.s32.totalorder %s118, %s119
      %p128 = scmp.eq.s32.totalorder %s24, 0
      %p129 = por %p127, %p128
      %p130 = scmp.ne.s32.totalorder %s118, %s119
      %p131 = scmp.eq.s32.totalorder %s25, 3
      %p132 = por %p130, %p131
      %p134 = scmp.ne.s32.totalorder %s119, %s133
      %p135 = scmp.eq.s32.totalorder %s25, 0
      %p136 = por %p134, %p135
      %s137 = ssub.s32 %s19, %s26
      %p138 = scmp.eq.s32.totalorder %s137, 0
      %s140 = sadd.s32 %s139, 1
      %s141 = scalar_select %p138, %s139, %s140
      %p144 = pneg %p138
      %p145 = scmp.eq.s32.totalorder %s19, 3
      %p146 = por %p144, %p145
      %p147 = scmp.ne.s32.totalorder %s139, %s142
      %p148 = scmp.eq.s32.totalorder %s19, 0
      %p149 = por %p147, %p148
      %p150 = scmp.ne.s32.totalorder %s139, %s142
      %p151 = scmp.eq.s32.totalorder %s24, 3
      %p152 = por %p150, %p151
      %p153 = scmp.ne.s32.totalorder %s142, %s143
      %p154 = scmp.eq.s32.totalorder %s24, 0
      %p155 = por %p153, %p154
      %p156 = scmp.ne.s32.totalorder %s142, %s143
      %p157 = scmp.eq.s32.totalorder %s25, 3
      %p158 = por %p156, %p157
      %p160 = scmp.ne.s32.totalorder %s143, %s159
      %p161 = scmp.eq.s32.totalorder %s25, 0
      %p162 = por %p160, %p161
      %p163 = scmp.le.s32.totalorder 1, %s19
      %p164 = scmp.lt.s32.totalorder %s19, 5
      %p165 = pnand %p163, %p164
      %p166 = pneg %p165
      // Predicated region
      $region9: #{gan_instance_forward.1} parent=5 // pred_check
        _
      $region10: #{gan_instance_forward.1} parent=5 // pred_check_branch
        %168 = sbr.rel (%p165) target = $region12
      $region11: #{gan_instance_forward.1} parent=5 // pred_region
        %s169 = ssub.s32 %s19, 1
        // Predicated region
        $region13: #{gan_instance_forward.1} parent=11 // pred_check
          %p170 = pneg %p66
        $region14: #{gan_instance_forward.1} parent=11 // pred_check_branch
          %172 = sbr.rel (%p170) target = $region16
        $region15: #{gan_instance_forward.1} parent=11 // pred_region
          %s174 = ssub.s32 5120, 5120
          %175 = vsyncadd [#allocation6], %s174
          %s176 = sshll.u32 [#allocation5], 4
          %s177 = int_to_ptr.vmem [resolvable:$true] %s176
          %182 = dma.hbm_to_vmem [thread:$0]  %s1, 5120, %s177, [#allocation6], 320, 320, 20
        $region16: #{gan_instance_forward.1} parent=11 // pred_fallthru
          _
        // Predicated region
        $region17: #{gan_instance_forward.1} parent=11 // pred_check
          %p183 = pneg %p87
        $region18: #{gan_instance_forward.1} parent=11 // pred_check_branch
          %185 = sbr.rel (%p183) target = $region20
        $region19: #{gan_instance_forward.1} parent=11 // pred_region
          %s187 = ssub.s32 25600, 25600
          %188 = vsyncadd [#allocation6], %s187
          %s189 = sshll.u32 [#allocation7], 4
          %s190 = int_to_ptr.vmem [resolvable:$true] %s189
          %195 = dma.hbm_to_vmem [thread:$0]  %s2, 25600, %s190, [#allocation6], 320, 320, 20
        $region20: #{gan_instance_forward.1} parent=11 // pred_fallthru
          _
        // Predicated region
        $region21: #{gan_instance_forward.1} parent=11 // pred_check
          %p196 = pneg %p108
        $region22: #{gan_instance_forward.1} parent=11 // pred_check_branch
          %198 = sbr.rel (%p196) target = $region24
        $region23: #{gan_instance_forward.1} parent=11 // pred_region
          %s200 = ssub.s32 5120, 5120
          %201 = vsyncadd [#allocation9], %s200
          %s202 = sshll.u32 [#allocation8], 4
          %s203 = int_to_ptr.vmem [resolvable:$true] %s202
          %208 = dma.hbm_to_vmem [thread:$0]  %s3, 5120, %s203, [#allocation9], 64, 64, 4
        $region24: #{gan_instance_forward.1} parent=11 // pred_fallthru
          _
        // Predicated region
        $region25: #{gan_instance_forward.1} parent=11 // pred_check
          %p209 = pneg %p129
        $region26: #{gan_instance_forward.1} parent=11 // pred_check_branch
          %211 = sbr.rel (%p209) target = $region28
        $region27: #{gan_instance_forward.1} parent=11 // pred_region
          %s213 = ssub.s32 176, 176
          %214 = vsyncadd [#allocation9], %s213
          %s216 = sshll.u32 [#allocation10], 4
          %s217 = int_to_ptr.vmem [resolvable:$true] %s216
          %219 = dma.hbm_to_vmem [thread:$0]  %s4, 176, %s217, [#allocation9]
        $region28: #{gan_instance_forward.1} parent=11 // pred_fallthru
          _
      $region12: #{gan_instance_forward.1} parent=5 // pred_fallthru
        _
      %p220 = scmp.lt.s32.totalorder %s19, 4
      // Predicated region
      $region29: #{gan_instance_forward.1} parent=5 // pred_check
        %p221 = pneg %p220
      $region30: #{gan_instance_forward.1} parent=5 // pred_check_branch
        %223 = sbr.rel (%p221) target = $region32
      $region31: #{gan_instance_forward.1} parent=5 // pred_region
        // Predicated region
        $region33: #{gan_instance_forward.1} parent=31 // pred_check
          %p224 = pneg %p39
        $region34: #{gan_instance_forward.1} parent=31 // pred_check_branch
          %226 = sbr.rel (%p224) target = $region36
        $region35: #{gan_instance_forward.1} parent=31 // pred_region
          %s227 = sand.u32 %s29, 1
          %s228 = scalar_lea.sflag [#allocation3], %s227
          %s229 = sand.u32 %s29, 1
          %s230 = smul.addr %s229, 8
          %s231 = scalar_lea.vmem [#allocation2], %s230
          %s233 = ssub.s32 128, 128
          %234 = vsyncadd %s228, %s233
          %s235 = smul.addr %s19, 128
          %s236 = scalar_lea.hbm %s0, %s235
          %s238 = sshll.u32 %s231, 4
          %s239 = int_to_ptr.vmem [resolvable:$true] %s238
          %241 = dma.hbm_to_vmem [thread:$0]  %s236, 128, %s239, %s228
        $region36: #{gan_instance_forward.1} parent=31 // pred_fallthru
          _
      $region32: #{gan_instance_forward.1} parent=5 // pred_fallthru
        _
      %p242 = scmp.le.s32.totalorder 1, %s19
      %p243 = scmp.lt.s32.totalorder %s19, 5
      %p244 = pnand %p242, %p243
      %p245 = pneg %p244
      // Predicated region
      $region37: #{gan_instance_forward.1} parent=5 // pred_check
        _
      $region38: #{gan_instance_forward.1} parent=5 // pred_check_branch
        %247 = sbr.rel (%p244) target = $region40
      $region39: #{gan_instance_forward.1} parent=5 // pred_region
        %s248 = ssub.s32 %s19, 1
        %s249 = sand.u32 %s32, 1
        %s250 = scalar_lea.sflag [#allocation3], %s249
        %s251 = sand.u32 %s32, 1
        %s252 = smul.addr %s251, 8
        %s253 = scalar_lea.vmem [#allocation2], %s252
        // Predicated region
        $region41: #{gan_instance_forward.1} parent=39 // pred_check
          %p254 = pneg %p45
        $region42: #{gan_instance_forward.1} parent=39 // pred_check_branch
          %256 = sbr.rel (%p254) target = $region44
        $region43: #{gan_instance_forward.1} parent=39 // pred_region
          %257 = dma.done %s250, 128
        $region44: #{gan_instance_forward.1} parent=39 // pred_fallthru
          _
        // Predicated region
        $region45: #{gan_instance_forward.1} parent=39 // pred_check
          %p258 = pneg %p66
        $region46: #{gan_instance_forward.1} parent=39 // pred_check_branch
          %260 = sbr.rel (%p258) target = $region48
        $region47: #{gan_instance_forward.1} parent=39 // pred_region
          %261 = dma.done [#allocation6], 5120
        $region48: #{gan_instance_forward.1} parent=39 // pred_fallthru
          _
        // Predicated region
        $region49: #{gan_instance_forward.1} parent=39 // pred_check
          %p262 = pneg %p87
        $region50: #{gan_instance_forward.1} parent=39 // pred_check_branch
          %264 = sbr.rel (%p262) target = $region52
        $region51: #{gan_instance_forward.1} parent=39 // pred_region
          %265 = dma.done [#allocation6], 25600
        $region52: #{gan_instance_forward.1} parent=39 // pred_fallthru
          _
        // Predicated region
        $region53: #{gan_instance_forward.1} parent=39 // pred_check
          %p266 = pneg %p108
        $region54: #{gan_instance_forward.1} parent=39 // pred_check_branch
          %268 = sbr.rel (%p266) target = $region56
        $region55: #{gan_instance_forward.1} parent=39 // pred_region
          %269 = dma.done [#allocation9], 5120
        $region56: #{gan_instance_forward.1} parent=39 // pred_fallthru
          _
        // Predicated region
        $region57: #{gan_instance_forward.1} parent=39 // pred_check
          %p270 = pneg %p129
        $region58: #{gan_instance_forward.1} parent=39 // pred_check_branch
          %272 = sbr.rel (%p270) target = $region60
        $region59: #{gan_instance_forward.1} parent=39 // pred_region
          %273 = dma.done [#allocation9], 176
        $region60: #{gan_instance_forward.1} parent=39 // pred_fallthru
          _
        %s274 = sand.u32 %s32, 1
        %s275 = scalar_lea.sflag [#allocation3], %s274
        %s276 = sand.u32 %s32, 1
        %s277 = smul.addr %s276, 8
        %s278 = scalar_lea.vmem [#allocation2], %s277
        %p279 = pneg %p45
        %p280 = pneg %p42
        %p281 = pneg %p66
        %p282 = pneg %p63
        %p283 = pneg %p87
        %p284 = pneg %p84
        %p285 = pneg %p108
        %p286 = pneg %p105
        %p287 = pneg %p129
        %p288 = pneg %p126
        %p289 = pneg %p155
        %p290 = pneg %p152
        %s291 = sand.u32 %s142, 1
        %s292 = scalar_lea.sflag [#allocation4], %s291
        %s293 = sand.u32 %s142, 1
        %s294 = smul.addr %s293, 8
        %s295 = scalar_lea.vmem [#allocation11], %s294
        %v297 = vld [vmem:[#allocation10] sm:$0x1f]
        %v298 = vld [vmem:[#allocation10 + $0x5] sm:$0x1f]
        %v299 = vld [vmem:[#allocation10 + $0xa] sm:$0x1]
        %v300 = vld [vmem:[%s253] sm:$0xff]
        %v301 = vpack.c.bf16 %v300, %v300
        %v302 = vld [vmem:[#allocation5] sm:$0xff]
        %v303 = vld [vmem:[#allocation5 + $0x8] sm:$0xff]
        %v304 = vld [vmem:[#allocation5 + $0x10] sm:$0xf]
        %v305 = vld [vmem:[#allocation5 + $0x14] sm:$0xff]
        %v306 = vld [vmem:[#allocation5 + $0x1c] sm:$0xff]
        %v307 = vld [vmem:[#allocation5 + $0x24] sm:$0xf]
        %v308 = vld [vmem:[#allocation5 + $0x28] sm:$0xff]
        %v309 = vld [vmem:[#allocation5 + $0x30] sm:$0xff]
        %v310 = vld [vmem:[#allocation5 + $0x38] sm:$0xf]
        %v311 = vld [vmem:[#allocation5 + $0x3c] sm:$0xff]
        %v312 = vld [vmem:[#allocation5 + $0x44] sm:$0xff]
        %v313 = vld [vmem:[#allocation5 + $0x4c] sm:$0xf]
        %v314 = vld [vmem:[#allocation5 + $0x50] sm:$0xff]
        %v315 = vld [vmem:[#allocation5 + $0x58] sm:$0xff]
        %v316 = vld [vmem:[#allocation5 + $0x60] sm:$0xf]
        %v317 = vld [vmem:[#allocation5 + $0x64] sm:$0xff]
        %v318 = vld [vmem:[#allocation5 + $0x6c] sm:$0xff]
        %v319 = vld [vmem:[#allocation5 + $0x74] sm:$0xf]
        %v320 = vld [vmem:[#allocation5 + $0x78] sm:$0xff]
        %v321 = vld [vmem:[#allocation5 + $0x80] sm:$0xff]
        %v322 = vld [vmem:[#allocation5 + $0x88] sm:$0xf]
        %v323 = vld [vmem:[#allocation5 + $0x8c] sm:$0xff]
        %v324 = vld [vmem:[#allocation5 + $0x94] sm:$0xff]
        %v325 = vld [vmem:[#allocation5 + $0x9c] sm:$0xf]
        %v326 = vld [vmem:[#allocation5 + $0xa0] sm:$0xff]
        %v327 = vld [vmem:[#allocation5 + $0xa8] sm:$0xff]
        %v328 = vld [vmem:[#allocation5 + $0xb0] sm:$0xf]
        %v329 = vld [vmem:[#allocation5 + $0xb4] sm:$0xff]
        %v330 = vld [vmem:[#allocation5 + $0xbc] sm:$0xff]
        %v331 = vld [vmem:[#allocation5 + $0xc4] sm:$0xf]
        %v332 = vld [vmem:[#allocation5 + $0xc8] sm:$0xff]
        %v333 = vld [vmem:[#allocation5 + $0xd0] sm:$0xff]
        %v334 = vld [vmem:[#allocation5 + $0xd8] sm:$0xf]
        %v335 = vld [vmem:[#allocation5 + $0xdc] sm:$0xff]
        %v336 = vld [vmem:[#allocation5 + $0xe4] sm:$0xff]
        %v337 = vld [vmem:[#allocation5 + $0xec] sm:$0xf]
        %v338 = vld [vmem:[#allocation5 + $0xf0] sm:$0xff]
        %v339 = vld [vmem:[#allocation5 + $0xf8] sm:$0xff]
        %v340 = vld [vmem:[#allocation5 + $0x100] sm:$0xf]
        %v341 = vld [vmem:[#allocation5 + $0x104] sm:$0xff]
        %v342 = vld [vmem:[#allocation5 + $0x10c] sm:$0xff]
        %v343 = vld [vmem:[#allocation5 + $0x114] sm:$0xf]
        %v344 = vld [vmem:[#allocation5 + $0x118] sm:$0xff]
        %v345 = vld [vmem:[#allocation5 + $0x120] sm:$0xff]
        %v346 = vld [vmem:[#allocation5 + $0x128] sm:$0xf]
        %v347 = vld [vmem:[#allocation5 + $0x12c] sm:$0xff]
        %v348 = vld [vmem:[#allocation5 + $0x134] sm:$0xff]
        %v349 = vld [vmem:[#allocation5 + $0x13c] sm:$0xf]
        %v351 = vlaneseq
        %v352 = vshrl.u32 %v351, 7
        %v353 = vsub.s32 0, %v352
        %v354 = vrot.slane %v297, %v353
        %v355 = vlaneseq
        %v356 = vshrl.u32 %v355, 7
        %v357 = vsub.s32 1, %v356
        %v358 = vrot.slane %v297, %v357
        %v359 = vlaneseq
        %v360 = vshrl.u32 %v359, 7
        %v361 = vsub.s32 2, %v360
        %v362 = vrot.slane %v297, %v361
        %v363 = vlaneseq
        %v364 = vshrl.u32 %v363, 7
        %v365 = vsub.s32 3, %v364
        %v366 = vrot.slane %v297, %v365
        %v367 = vlaneseq
        %v368 = vshrl.u32 %v367, 7
        %v369 = vsub.s32 4, %v368
        %v370 = vrot.slane %v297, %v369
        %v424 = vunpack.c.l.b16 %v302
        %v425 = vunpack.c.h.b16 %v302
        %v426 = vunpack.c.l.b16 %v303
        %v427 = vunpack.c.h.b16 %v303
        %v428 = vunpack.c.l.b16 %v304
        %v429 = vunpack.c.l.b16 %v305
        %v430 = vunpack.c.h.b16 %v305
        %v431 = vunpack.c.l.b16 %v306
        %v432 = vunpack.c.h.b16 %v306
        %v433 = vunpack.c.l.b16 %v307
        %v434 = vunpack.c.l.b16 %v308
        %v435 = vunpack.c.h.b16 %v308
        %v436 = vunpack.c.l.b16 %v309
        %v437 = vunpack.c.h.b16 %v309
        %v438 = vunpack.c.l.b16 %v310
        %v439 = vunpack.c.l.b16 %v311
        %v440 = vunpack.c.h.b16 %v311
        %v441 = vunpack.c.l.b16 %v312
        %v442 = vunpack.c.h.b16 %v312
        %v443 = vunpack.c.l.b16 %v313
        %v444 = vunpack.c.l.b16 %v314
        %v445 = vunpack.c.h.b16 %v314
        %v446 = vunpack.c.l.b16 %v315
        %v447 = vunpack.c.h.b16 %v315
        %v448 = vunpack.c.l.b16 %v316
        %v449 = vunpack.c.l.b16 %v317
        %v450 = vunpack.c.h.b16 %v317
        %v451 = vunpack.c.l.b16 %v318
        %v452 = vunpack.c.h.b16 %v318
        %v453 = vunpack.c.l.b16 %v319
        %v454 = vunpack.c.l.b16 %v320
        %v455 = vunpack.c.h.b16 %v320
        %v456 = vunpack.c.l.b16 %v321
        %v457 = vunpack.c.h.b16 %v321
        %v458 = vunpack.c.l.b16 %v322
        %v459 = vunpack.c.l.b16 %v323
        %v460 = vunpack.c.h.b16 %v323
        %v461 = vunpack.c.l.b16 %v324
        %v462 = vunpack.c.h.b16 %v324
        %v463 = vunpack.c.l.b16 %v325
        %v464 = vunpack.c.l.b16 %v326
        %v465 = vunpack.c.h.b16 %v326
        %v466 = vunpack.c.l.b16 %v327
        %v467 = vunpack.c.h.b16 %v327
        %v468 = vunpack.c.l.b16 %v328
        %v469 = vunpack.c.l.b16 %v329
        %v470 = vunpack.c.h.b16 %v329
        %v471 = vunpack.c.l.b16 %v330
        %v472 = vunpack.c.h.b16 %v330
        %v473 = vunpack.c.l.b16 %v331
        %v474 = vunpack.c.l.b16 %v332
        %v475 = vunpack.c.h.b16 %v332
        %v476 = vunpack.c.l.b16 %v333
        %v477 = vunpack.c.h.b16 %v333
        %v478 = vunpack.c.l.b16 %v334
        %v479 = vunpack.c.l.b16 %v335
        %v480 = vunpack.c.h.b16 %v335
        %v481 = vunpack.c.l.b16 %v336
        %v482 = vunpack.c.h.b16 %v336
        %v483 = vunpack.c.l.b16 %v337
        %v484 = vunpack.c.l.b16 %v338
        %v485 = vunpack.c.h.b16 %v338
        %v486 = vunpack.c.l.b16 %v339
        %v487 = vunpack.c.h.b16 %v339
        %v488 = vunpack.c.l.b16 %v340
        %v489 = vunpack.c.l.b16 %v341
        %v490 = vunpack.c.h.b16 %v341
        %v491 = vunpack.c.l.b16 %v342
        %v492 = vunpack.c.h.b16 %v342
        %v493 = vunpack.c.l.b16 %v343
        %v494 = vunpack.c.l.b16 %v344
        %v495 = vunpack.c.h.b16 %v344
        %v496 = vunpack.c.l.b16 %v345
        %v497 = vunpack.c.h.b16 %v345
        %v498 = vunpack.c.l.b16 %v346
        %v499 = vunpack.c.l.b16 %v347
        %v500 = vunpack.c.h.b16 %v347
        %v501 = vunpack.c.l.b16 %v348
        %v502 = vunpack.c.h.b16 %v348
        %v503 = vunpack.c.l.b16 %v349
        %v504 = vpack.c.b16 %v429, %v424
        %v505 = vpack.c.b16 %v430, %v425
        %v506 = vpack.c.b16 %v431, %v426
        %v507 = vpack.c.b16 %v432, %v427
        %v508 = vpack.c.b16 %v433, %v428
        %v509 = vpack.c.b16 %v439, %v434
        %v510 = vpack.c.b16 %v440, %v435
        %v511 = vpack.c.b16 %v441, %v436
        %v512 = vpack.c.b16 %v442, %v437
        %v513 = vpack.c.b16 %v443, %v438
        %v514 = vpack.c.b16 %v449, %v444
        %v515 = vpack.c.b16 %v450, %v445
        %v516 = vpack.c.b16 %v451, %v446
        %v517 = vpack.c.b16 %v452, %v447
        %v518 = vpack.c.b16 %v453, %v448
        %v519 = vpack.c.b16 %v459, %v454
        %v520 = vpack.c.b16 %v460, %v455
        %v521 = vpack.c.b16 %v461, %v456
        %v522 = vpack.c.b16 %v462, %v457
        %v523 = vpack.c.b16 %v463, %v458
        %v524 = vpack.c.b16 %v469, %v464
        %v525 = vpack.c.b16 %v470, %v465
        %v526 = vpack.c.b16 %v471, %v466
        %v527 = vpack.c.b16 %v472, %v467
        %v528 = vpack.c.b16 %v473, %v468
        %v529 = vpack.c.b16 %v479, %v474
        %v530 = vpack.c.b16 %v480, %v475
        %v531 = vpack.c.b16 %v481, %v476
        %v532 = vpack.c.b16 %v482, %v477
        %v533 = vpack.c.b16 %v483, %v478
        %v534 = vpack.c.b16 %v489, %v484
        %v535 = vpack.c.b16 %v490, %v485
        %v536 = vpack.c.b16 %v491, %v486
        %v537 = vpack.c.b16 %v492, %v487
        %v538 = vpack.c.b16 %v493, %v488
        %v539 = vpack.c.b16 %v499, %v494
        %v540 = vpack.c.b16 %v500, %v495
        %v541 = vpack.c.b16 %v501, %v496
        %v542 = vpack.c.b16 %v502, %v497
        %v543 = vpack.c.b16 %v503, %v498
        %584 = vmatprep.subr.bf16.mxu0 %v505
        %585 = vmatpush1.bf16.msra.mxu0 %v504
        %586 = vmatprep.subr.bf16.mxu0 %v510
        %587 = vmatpush1.bf16.msra.mxu0 %v509
        %588 = vmatprep.subr.bf16.mxu0 %v515
        %589 = vmatpush1.bf16.msra.mxu0 %v514
        %590 = vmatprep.subr.bf16.mxu0 %v520
        %591 = vmatpush1.bf16.msra.mxu0 %v519
        %592 = vmatprep.subr.bf16.mxu0 %v525
        %593 = vmatpush1.bf16.msra.mxu0 %v524
        %594 = vmatprep.subr.bf16.mxu0 %v530
        %595 = vmatpush1.bf16.msra.mxu0 %v529
        %596 = vmatprep.subr.bf16.mxu0 %v535
        %597 = vmatpush1.bf16.msra.mxu0 %v534
        %598 = vmatprep.subr.bf16.mxu0 %v540
        %599 = vmatpush1.bf16.msra.mxu0 %v539
        %600 = vmatprep.subr.bf16.mxu0 0
        %601 = vmatpush1.bf16.msra.mxu0 0
        %602 = vmatprep.subr.bf16.mxu0 0
        %603 = vmatpush1.bf16.msra.mxu0 0
        %604 = vmatprep.subr.bf16.mxu0 0
        %605 = vmatpush1.bf16.msra.mxu0 0
        %606 = vmatprep.subr.bf16.mxu0 0
        %607 = vmatpush1.bf16.msra.mxu0 0
        %608 = vmatprep.subr.bf16.mxu0 0
        %609 = vmatpush1.bf16.msra.mxu0 0
        %610 = vmatprep.subr.bf16.mxu0 0
        %611 = vmatpush1.bf16.msra.mxu0 0
        %612 = vmatprep.subr.bf16.mxu0 0
        %613 = vmatpush1.bf16.msra.mxu0 0
        %614 = vmatprep.subr.bf16.mxu0 0
        %615 = vmatpush1.bf16.msra.mxu0 0
        %616 = vmatprep.mubr.bf16.mxu0 0
        %617 = vmatmul.mubr.bf16.gmra.mrb[0].mxu0 %v301
        %v618 = vpop.f32.mrb[0].mxu0
        %v619 = vadd.f32 %v354, %v618
        %v620 = vpop.f32.mrb[0].mxu0
        %v621 = vadd.f32 %v358, %v620
        %v622 = vpop.f32.mrb[0].mxu0
        %v623 = vpop.f32.mrb[0].mxu0
        %624 = vdwg.mxu0
        %625 = vmatprep.subr.bf16.mxu0 %v507
        %626 = vmatpush1.bf16.msra.mxu0 %v506
        %627 = vmatprep.subr.bf16.mxu0 %v512
        %628 = vmatpush1.bf16.msra.mxu0 %v511
        %629 = vmatprep.subr.bf16.mxu0 %v517
        %630 = vmatpush1.bf16.msra.mxu0 %v516
        %631 = vmatprep.subr.bf16.mxu0 %v522
        %632 = vmatpush1.bf16.msra.mxu0 %v521
        %633 = vmatprep.subr.bf16.mxu0 %v527
        %634 = vmatpush1.bf16.msra.mxu0 %v526
        %635 = vmatprep.subr.bf16.mxu0 %v532
        %636 = vmatpush1.bf16.msra.mxu0 %v531
        %637 = vmatprep.subr.bf16.mxu0 %v537
        %638 = vmatpush1.bf16.msra.mxu0 %v536
        %639 = vmatprep.subr.bf16.mxu0 %v542
        %640 = vmatpush1.bf16.msra.mxu0 %v541
        %641 = vmatprep.subr.bf16.mxu0 0
        %642 = vmatpush1.bf16.msra.mxu0 0
        %643 = vmatprep.subr.bf16.mxu0 0
        %644 = vmatpush1.bf16.msra.mxu0 0
        %645 = vmatprep.subr.bf16.mxu0 0
        %646 = vmatpush1.bf16.msra.mxu0 0
        %647 = vmatprep.subr.bf16.mxu0 0
        %648 = vmatpush1.bf16.msra.mxu0 0
        %649 = vmatprep.subr.bf16.mxu0 0
        %650 = vmatpush1.bf16.msra.mxu0 0
        %651 = vmatprep.subr.bf16.mxu0 0
        %652 = vmatpush1.bf16.msra.mxu0 0
        %653 = vmatprep.subr.bf16.mxu0 0
        %654 = vmatpush1.bf16.msra.mxu0 0
        %655 = vmatprep.subr.bf16.mxu0 0
        %656 = vmatpush1.bf16.msra.mxu0 0
        %657 = vmatprep.mubr.bf16.mxu0 0
        %658 = vmatmul.mubr.bf16.gmra.mrb[0].mxu0 %v301
        %v659 = vpop.f32.mrb[0].mxu0
        %v660 = vadd.f32 %v362, %v659
        %v661 = vpop.f32.mrb[0].mxu0
        %v662 = vadd.f32 %v366, %v661
        %v663 = vpop.f32.mrb[0].mxu0
        %v664 = vpop.f32.mrb[0].mxu0
        %665 = vdwg.mxu0
        %666 = vmatprep.subr.bf16.mxu0 0
        %667 = vmatpush1.bf16.msra.mxu0 %v508
        %668 = vmatprep.subr.bf16.mxu0 0
        %669 = vmatpush1.bf16.msra.mxu0 %v513
        %670 = vmatprep.subr.bf16.mxu0 0
        %671 = vmatpush1.bf16.msra.mxu0 %v518
        %672 = vmatprep.subr.bf16.mxu0 0
        %673 = vmatpush1.bf16.msra.mxu0 %v523
        %674 = vmatprep.subr.bf16.mxu0 0
        %675 = vmatpush1.bf16.msra.mxu0 %v528
        %676 = vmatprep.subr.bf16.mxu0 0
        %677 = vmatpush1.bf16.msra.mxu0 %v533
        %678 = vmatprep.subr.bf16.mxu0 0
        %679 = vmatpush1.bf16.msra.mxu0 %v538
        %680 = vmatprep.subr.bf16.mxu0 0
        %681 = vmatpush1.bf16.msra.mxu0 %v543
        %682 = vmatprep.subr.bf16.mxu0 0
        %683 = vmatpush1.bf16.msra.mxu0 0
        %684 = vmatprep.subr.bf16.mxu0 0
        %685 = vmatpush1.bf16.msra.mxu0 0
        %686 = vmatprep.subr.bf16.mxu0 0
        %687 = vmatpush1.bf16.msra.mxu0 0
        %688 = vmatprep.subr.bf16.mxu0 0
        %689 = vmatpush1.bf16.msra.mxu0 0
        %690 = vmatprep.subr.bf16.mxu0 0
        %691 = vmatpush1.bf16.msra.mxu0 0
        %692 = vmatprep.subr.bf16.mxu0 0
        %693 = vmatpush1.bf16.msra.mxu0 0
        %694 = vmatprep.subr.bf16.mxu0 0
        %695 = vmatpush1.bf16.msra.mxu0 0
        %696 = vmatprep.subr.bf16.mxu0 0
        %697 = vmatpush1.bf16.msra.mxu0 0
        %698 = vmatprep.mubr.bf16.mxu0 0
        %699 = vmatmul.mubr.bf16.gmra.mrb[0].mxu0 %v301
        %v700 = vpop.f32.mrb[0].mxu0
        %v701 = vadd.f32 %v370, %v700
        %v702 = vpop.f32.mrb[0].mxu0
        %v703 = vpop.f32.mrb[0].mxu0
        %v704 = vpop.f32.mrb[0].mxu0
        %705 = vdwg.mxu0
        %v706 = vpack.c.bf16 %v619, %v619
        %v707 = vpack.c.bf16 %v621, %v621
        %v708 = vpack.c.bf16 %v660, %v660
        %v709 = vpack.c.bf16 %v662, %v662
        %v710 = vpack.c.bf16 %v701, %v701
        %v711 = vld [vmem:[#allocation7] sm:$0xff]
        %v712 = vld [vmem:[#allocation7 + $0x8] sm:$0xff]
        %v713 = vld [vmem:[#allocation7 + $0x10] sm:$0xf]
        %v714 = vld [vmem:[#allocation7 + $0x14] sm:$0xff]
        %v715 = vld [vmem:[#allocation7 + $0x1c] sm:$0xff]
        %v716 = vld [vmem:[#allocation7 + $0x24] sm:$0xf]
        %v717 = vld [vmem:[#allocation7 + $0x28] sm:$0xff]
        %v718 = vld [vmem:[#allocation7 + $0x30] sm:$0xff]
        %v719 = vld [vmem:[#allocation7 + $0x38] sm:$0xf]
        %v720 = vld [vmem:[#allocation7 + $0x3c] sm:$0xff]
        %v721 = vld [vmem:[#allocation7 + $0x44] sm:$0xff]
        %v722 = vld [vmem:[#allocation7 + $0x4c] sm:$0xf]
        %v723 = vld [vmem:[#allocation7 + $0x50] sm:$0xff]
        %v724 = vld [vmem:[#allocation7 + $0x58] sm:$0xff]
        %v725 = vld [vmem:[#allocation7 + $0x60] sm:$0xf]
        %v726 = vld [vmem:[#allocation7 + $0x64] sm:$0xff]
        %v727 = vld [vmem:[#allocation7 + $0x6c] sm:$0xff]
        %v728 = vld [vmem:[#allocation7 + $0x74] sm:$0xf]
        %v729 = vld [vmem:[#allocation7 + $0x78] sm:$0xff]
        %v730 = vld [vmem:[#allocation7 + $0x80] sm:$0xff]
        %v731 = vld [vmem:[#allocation7 + $0x88] sm:$0xf]
        %v732 = vld [vmem:[#allocation7 + $0x8c] sm:$0xff]
        %v733 = vld [vmem:[#allocation7 + $0x94] sm:$0xff]
        %v734 = vld [vmem:[#allocation7 + $0x9c] sm:$0xf]
        %v735 = vld [vmem:[#allocation7 + $0xa0] sm:$0xff]
        %v736 = vld [vmem:[#allocation7 + $0xa8] sm:$0xff]
        %v737 = vld [vmem:[#allocation7 + $0xb0] sm:$0xf]
        %v738 = vld [vmem:[#allocation7 + $0xb4] sm:$0xff]
        %v739 = vld [vmem:[#allocation7 + $0xbc] sm:$0xff]
        %v740 = vld [vmem:[#allocation7 + $0xc4] sm:$0xf]
        %v741 = vld [vmem:[#allocation7 + $0xc8] sm:$0xff]
        %v742 = vld [vmem:[#allocation7 + $0xd0] sm:$0xff]
        %v743 = vld [vmem:[#allocation7 + $0xd8] sm:$0xf]
        %v744 = vld [vmem:[#allocation7 + $0xdc] sm:$0xff]
        %v745 = vld [vmem:[#allocation7 + $0xe4] sm:$0xff]
        %v746 = vld [vmem:[#allocation7 + $0xec] sm:$0xf]
        %v747 = vld [vmem:[#allocation7 + $0xf0] sm:$0xff]
        %v748 = vld [vmem:[#allocation7 + $0xf8] sm:$0xff]
        %v749 = vld [vmem:[#allocation7 + $0x100] sm:$0xf]
        %v750 = vld [vmem:[#allocation7 + $0x104] sm:$0xff]
        %v751 = vld [vmem:[#allocation7 + $0x10c] sm:$0xff]
        %v752 = vld [vmem:[#allocation7 + $0x114] sm:$0xf]
        %v753 = vld [vmem:[#allocation7 + $0x118] sm:$0xff]
        %v754 = vld [vmem:[#allocation7 + $0x120] sm:$0xff]
        %v755 = vld [vmem:[#allocation7 + $0x128] sm:$0xf]
        %v756 = vld [vmem:[#allocation7 + $0x12c] sm:$0xff]
        %v757 = vld [vmem:[#allocation7 + $0x134] sm:$0xff]
        %v758 = vld [vmem:[#allocation7 + $0x13c] sm:$0xf]
        %v759 = vld [vmem:[#allocation7 + $0x140] sm:$0xff]
        %v760 = vld [vmem:[#allocation7 + $0x148] sm:$0xff]
        %v761 = vld [vmem:[#allocation7 + $0x150] sm:$0xf]
        %v762 = vld [vmem:[#allocation7 + $0x154] sm:$0xff]
        %v763 = vld [vmem:[#allocation7 + $0x15c] sm:$0xff]
        %v764 = vld [vmem:[#allocation7 + $0x164] sm:$0xf]
        %v765 = vld [vmem:[#allocation7 + $0x168] sm:$0xff]
        %v766 = vld [vmem:[#allocation7 + $0x170] sm:$0xff]
        %v767 = vld [vmem:[#allocation7 + $0x178] sm:$0xf]
        %v768 = vld [vmem:[#allocation7 + $0x17c] sm:$0xff]
        %v769 = vld [vmem:[#allocation7 + $0x184] sm:$0xff]
        %v770 = vld [vmem:[#allocation7 + $0x18c] sm:$0xf]
        %v771 = vld [vmem:[#allocation7 + $0x190] sm:$0xff]
        %v772 = vld [vmem:[#allocation7 + $0x198] sm:$0xff]
        %v773 = vld [vmem:[#allocation7 + $0x1a0] sm:$0xf]
        %v774 = vld [vmem:[#allocation7 + $0x1a4] sm:$0xff]
        %v775 = vld [vmem:[#allocation7 + $0x1ac] sm:$0xff]
        %v776 = vld [vmem:[#allocation7 + $0x1b4] sm:$0xf]
        %v777 = vld [vmem:[#allocation7 + $0x1b8] sm:$0xff]
        %v778 = vld [vmem:[#allocation7 + $0x1c0] sm:$0xff]
        %v779 = vld [vmem:[#allocation7 + $0x1c8] sm:$0xf]
        %v780 = vld [vmem:[#allocation7 + $0x1cc] sm:$0xff]
        %v781 = vld [vmem:[#allocation7 + $0x1d4] sm:$0xff]
        %v782 = vld [vmem:[#allocation7 + $0x1dc] sm:$0xf]
        %v783 = vld [vmem:[#allocation7 + $0x1e0] sm:$0xff]
        %v784 = vld [vmem:[#allocation7 + $0x1e8] sm:$0xff]
        %v785 = vld [vmem:[#allocation7 + $0x1f0] sm:$0xf]
        %v786 = vld [vmem:[#allocation7 + $0x1f4] sm:$0xff]
        %v787 = vld [vmem:[#allocation7 + $0x1fc] sm:$0xff]
        %v788 = vld [vmem:[#allocation7 + $0x204] sm:$0xf]
        %v789 = vld [vmem:[#allocation7 + $0x208] sm:$0xff]
        %v790 = vld [vmem:[#allocation7 + $0x210] sm:$0xff]
        %v791 = vld [vmem:[#allocation7 + $0x218] sm:$0xf]
        %v792 = vld [vmem:[#allocation7 + $0x21c] sm:$0xff]
        %v793 = vld [vmem:[#allocation7 + $0x224] sm:$0xff]
        %v794 = vld [vmem:[#allocation7 + $0x22c] sm:$0xf]
        %v795 = vld [vmem:[#allocation7 + $0x230] sm:$0xff]
        %v796 = vld [vmem:[#allocation7 + $0x238] sm:$0xff]
        %v797 = vld [vmem:[#allocation7 + $0x240] sm:$0xf]
        %v798 = vld [vmem:[#allocation7 + $0x244] sm:$0xff]
        %v799 = vld [vmem:[#allocation7 + $0x24c] sm:$0xff]
        %v800 = vld [vmem:[#allocation7 + $0x254] sm:$0xf]
        %v801 = vld [vmem:[#allocation7 + $0x258] sm:$0xff]
        %v802 = vld [vmem:[#allocation7 + $0x260] sm:$0xff]
        %v803 = vld [vmem:[#allocation7 + $0x268] sm:$0xf]
        %v804 = vld [vmem:[#allocation7 + $0x26c] sm:$0xff]
        %v805 = vld [vmem:[#allocation7 + $0x274] sm:$0xff]
        %v806 = vld [vmem:[#allocation7 + $0x27c] sm:$0xf]
        %v807 = vld [vmem:[#allocation7 + $0x280] sm:$0xff]
        %v808 = vld [vmem:[#allocation7 + $0x288] sm:$0xff]
        %v809 = vld [vmem:[#allocation7 + $0x290] sm:$0xf]
        %v810 = vld [vmem:[#allocation7 + $0x294] sm:$0xff]
        %v811 = vld [vmem:[#allocation7 + $0x29c] sm:$0xff]
        %v812 = vld [vmem:[#allocation7 + $0x2a4] sm:$0xf]
        %v813 = vld [vmem:[#allocation7 + $0x2a8] sm:$0xff]
        %v814 = vld [vmem:[#allocation7 + $0x2b0] sm:$0xff]
        %v815 = vld [vmem:[#allocation7 + $0x2b8] sm:$0xf]
        %v816 = vld [vmem:[#allocation7 + $0x2bc] sm:$0xff]
        %v817 = vld [vmem:[#allocation7 + $0x2c4] sm:$0xff]
        %v818 = vld [vmem:[#allocation7 + $0x2cc] sm:$0xf]
        %v819 = vld [vmem:[#allocation7 + $0x2d0] sm:$0xff]
        %v820 = vld [vmem:[#allocation7 + $0x2d8] sm:$0xff]
        %v821 = vld [vmem:[#allocation7 + $0x2e0] sm:$0xf]
        %v822 = vld [vmem:[#allocation7 + $0x2e4] sm:$0xff]
        %v823 = vld [vmem:[#allocation7 + $0x2ec] sm:$0xff]
        %v824 = vld [vmem:[#allocation7 + $0x2f4] sm:$0xf]
        %v825 = vld [vmem:[#allocation7 + $0x2f8] sm:$0xff]
        %v826 = vld [vmem:[#allocation7 + $0x300] sm:$0xff]
        %v827 = vld [vmem:[#allocation7 + $0x308] sm:$0xf]
        %v828 = vld [vmem:[#allocation7 + $0x30c] sm:$0xff]
        %v829 = vld [vmem:[#allocation7 + $0x314] sm:$0xff]
        %v830 = vld [vmem:[#allocation7 + $0x31c] sm:$0xf]
        %v831 = vld [vmem:[#allocation7 + $0x320] sm:$0xff]
        %v832 = vld [vmem:[#allocation7 + $0x328] sm:$0xff]
        %v833 = vld [vmem:[#allocation7 + $0x330] sm:$0xf]
        %v834 = vld [vmem:[#allocation7 + $0x334] sm:$0xff]
        %v835 = vld [vmem:[#allocation7 + $0x33c] sm:$0xff]
        %v836 = vld [vmem:[#allocation7 + $0x344] sm:$0xf]
        %v837 = vld [vmem:[#allocation7 + $0x348] sm:$0xff]
        %v838 = vld [vmem:[#allocation7 + $0x350] sm:$0xff]
        %v839 = vld [vmem:[#allocation7 + $0x358] sm:$0xf]
        %v840 = vld [vmem:[#allocation7 + $0x35c] sm:$0xff]
        %v841 = vld [vmem:[#allocation7 + $0x364] sm:$0xff]
        %v842 = vld [vmem:[#allocation7 + $0x36c] sm:$0xf]
        %v843 = vld [vmem:[#allocation7 + $0x370] sm:$0xff]
        %v844 = vld [vmem:[#allocation7 + $0x378] sm:$0xff]
        %v845 = vld [vmem:[#allocation7 + $0x380] sm:$0xf]
        %v846 = vld [vmem:[#allocation7 + $0x384] sm:$0xff]
        %v847 = vld [vmem:[#allocation7 + $0x38c] sm:$0xff]
        %v848 = vld [vmem:[#allocation7 + $0x394] sm:$0xf]
        %v849 = vld [vmem:[#allocation7 + $0x398] sm:$0xff]
        %v850 = vld [vmem:[#allocation7 + $0x3a0] sm:$0xff]
        %v851 = vld [vmem:[#allocation7 + $0x3a8] sm:$0xf]
        %v852 = vld [vmem:[#allocation7 + $0x3ac] sm:$0xff]
        %v853 = vld [vmem:[#allocation7 + $0x3b4] sm:$0xff]
        %v854 = vld [vmem:[#allocation7 + $0x3bc] sm:$0xf]
        %v855 = vld [vmem:[#allocation7 + $0x3c0] sm:$0xff]
        %v856 = vld [vmem:[#allocation7 + $0x3c8] sm:$0xff]
        %v857 = vld [vmem:[#allocation7 + $0x3d0] sm:$0xf]
        %v858 = vld [vmem:[#allocation7 + $0x3d4] sm:$0xff]
        %v859 = vld [vmem:[#allocation7 + $0x3dc] sm:$0xff]
        %v860 = vld [vmem:[#allocation7 + $0x3e4] sm:$0xf]
        %v861 = vld [vmem:[#allocation7 + $0x3e8] sm:$0xff]
        %v862 = vld [vmem:[#allocation7 + $0x3f0] sm:$0xff]
        %v863 = vld [vmem:[#allocation7 + $0x3f8] sm:$0xf]
        %v864 = vld [vmem:[#allocation7 + $0x3fc] sm:$0xff]
        %v865 = vld [vmem:[#allocation7 + $0x404] sm:$0xff]
        %v866 = vld [vmem:[#allocation7 + $0x40c] sm:$0xf]
        %v867 = vld [vmem:[#allocation7 + $0x410] sm:$0xff]
        %v868 = vld [vmem:[#allocation7 + $0x418] sm:$0xff]
        %v869 = vld [vmem:[#allocation7 + $0x420] sm:$0xf]
        %v870 = vld [vmem:[#allocation7 + $0x424] sm:$0xff]
        %v871 = vld [vmem:[#allocation7 + $0x42c] sm:$0xff]
        %v872 = vld [vmem:[#allocation7 + $0x434] sm:$0xf]
        %v873 = vld [vmem:[#allocation7 + $0x438] sm:$0xff]
        %v874 = vld [vmem:[#allocation7 + $0x440] sm:$0xff]
        %v875 = vld [vmem:[#allocation7 + $0x448] sm:$0xf]
        %v876 = vld [vmem:[#allocation7 + $0x44c] sm:$0xff]
        %v877 = vld [vmem:[#allocation7 + $0x454] sm:$0xff]
        %v878 = vld [vmem:[#allocation7 + $0x45c] sm:$0xf]
        %v879 = vld [vmem:[#allocation7 + $0x460] sm:$0xff]
        %v880 = vld [vmem:[#allocation7 + $0x468] sm:$0xff]
        %v881 = vld [vmem:[#allocation7 + $0x470] sm:$0xf]
        %v882 = vld [vmem:[#allocation7 + $0x474] sm:$0xff]
        %v883 = vld [vmem:[#allocation7 + $0x47c] sm:$0xff]
        %v884 = vld [vmem:[#allocation7 + $0x484] sm:$0xf]
        %v885 = vld [vmem:[#allocation7 + $0x488] sm:$0xff]
        %v886 = vld [vmem:[#allocation7 + $0x490] sm:$0xff]
        %v887 = vld [vmem:[#allocation7 + $0x498] sm:$0xf]
        %v888 = vld [vmem:[#allocation7 + $0x49c] sm:$0xff]
        %v889 = vld [vmem:[#allocation7 + $0x4a4] sm:$0xff]
        %v890 = vld [vmem:[#allocation7 + $0x4ac] sm:$0xf]
        %v891 = vld [vmem:[#allocation7 + $0x4b0] sm:$0xff]
        %v892 = vld [vmem:[#allocation7 + $0x4b8] sm:$0xff]
        %v893 = vld [vmem:[#allocation7 + $0x4c0] sm:$0xf]
        %v894 = vld [vmem:[#allocation7 + $0x4c4] sm:$0xff]
        %v895 = vld [vmem:[#allocation7 + $0x4cc] sm:$0xff]
        %v896 = vld [vmem:[#allocation7 + $0x4d4] sm:$0xf]
        %v897 = vld [vmem:[#allocation7 + $0x4d8] sm:$0xff]
        %v898 = vld [vmem:[#allocation7 + $0x4e0] sm:$0xff]
        %v899 = vld [vmem:[#allocation7 + $0x4e8] sm:$0xf]
        %v900 = vld [vmem:[#allocation7 + $0x4ec] sm:$0xff]
        %v901 = vld [vmem:[#allocation7 + $0x4f4] sm:$0xff]
        %v902 = vld [vmem:[#allocation7 + $0x4fc] sm:$0xf]
        %v903 = vld [vmem:[#allocation7 + $0x500] sm:$0xff]
        %v904 = vld [vmem:[#allocation7 + $0x508] sm:$0xff]
        %v905 = vld [vmem:[#allocation7 + $0x510] sm:$0xf]
        %v906 = vld [vmem:[#allocation7 + $0x514] sm:$0xff]
        %v907 = vld [vmem:[#allocation7 + $0x51c] sm:$0xff]
        %v908 = vld [vmem:[#allocation7 + $0x524] sm:$0xf]
        %v909 = vld [vmem:[#allocation7 + $0x528] sm:$0xff]
        %v910 = vld [vmem:[#allocation7 + $0x530] sm:$0xff]
        %v911 = vld [vmem:[#allocation7 + $0x538] sm:$0xf]
        %v912 = vld [vmem:[#allocation7 + $0x53c] sm:$0xff]
        %v913 = vld [vmem:[#allocation7 + $0x544] sm:$0xff]
        %v914 = vld [vmem:[#allocation7 + $0x54c] sm:$0xf]
        %v915 = vld [vmem:[#allocation7 + $0x550] sm:$0xff]
        %v916 = vld [vmem:[#allocation7 + $0x558] sm:$0xff]
        %v917 = vld [vmem:[#allocation7 + $0x560] sm:$0xf]
        %v918 = vld [vmem:[#allocation7 + $0x564] sm:$0xff]
        %v919 = vld [vmem:[#allocation7 + $0x56c] sm:$0xff]
        %v920 = vld [vmem:[#allocation7 + $0x574] sm:$0xf]
        %v921 = vld [vmem:[#allocation7 + $0x578] sm:$0xff]
        %v922 = vld [vmem:[#allocation7 + $0x580] sm:$0xff]
        %v923 = vld [vmem:[#allocation7 + $0x588] sm:$0xf]
        %v924 = vld [vmem:[#allocation7 + $0x58c] sm:$0xff]
        %v925 = vld [vmem:[#allocation7 + $0x594] sm:$0xff]
        %v926 = vld [vmem:[#allocation7 + $0x59c] sm:$0xf]
        %v927 = vld [vmem:[#allocation7 + $0x5a0] sm:$0xff]
        %v928 = vld [vmem:[#allocation7 + $0x5a8] sm:$0xff]
        %v929 = vld [vmem:[#allocation7 + $0x5b0] sm:$0xf]
        %v930 = vld [vmem:[#allocation7 + $0x5b4] sm:$0xff]
        %v931 = vld [vmem:[#allocation7 + $0x5bc] sm:$0xff]
        %v932 = vld [vmem:[#allocation7 + $0x5c4] sm:$0xf]
        %v933 = vld [vmem:[#allocation7 + $0x5c8] sm:$0xff]
        %v934 = vld [vmem:[#allocation7 + $0x5d0] sm:$0xff]
        %v935 = vld [vmem:[#allocation7 + $0x5d8] sm:$0xf]
        %v936 = vld [vmem:[#allocation7 + $0x5dc] sm:$0xff]
        %v937 = vld [vmem:[#allocation7 + $0x5e4] sm:$0xff]
        %v938 = vld [vmem:[#allocation7 + $0x5ec] sm:$0xf]
        %v939 = vld [vmem:[#allocation7 + $0x5f0] sm:$0xff]
        %v940 = vld [vmem:[#allocation7 + $0x5f8] sm:$0xff]
        %v941 = vld [vmem:[#allocation7 + $0x600] sm:$0xf]
        %v942 = vld [vmem:[#allocation7 + $0x604] sm:$0xff]
        %v943 = vld [vmem:[#allocation7 + $0x60c] sm:$0xff]
        %v944 = vld [vmem:[#allocation7 + $0x614] sm:$0xf]
        %v945 = vld [vmem:[#allocation7 + $0x618] sm:$0xff]
        %v946 = vld [vmem:[#allocation7 + $0x620] sm:$0xff]
        %v947 = vld [vmem:[#allocation7 + $0x628] sm:$0xf]
        %v948 = vld [vmem:[#allocation7 + $0x62c] sm:$0xff]
        %v949 = vld [vmem:[#allocation7 + $0x634] sm:$0xff]
        %v950 = vld [vmem:[#allocation7 + $0x63c] sm:$0xf]
        %v952 = vlaneseq
        %v953 = vshrl.u32 %v952, 7
        %v954 = vsub.s32 0, %v953
        %v955 = vrot.slane %v298, %v954
        %v956 = vlaneseq
        %v957 = vshrl.u32 %v956, 7
        %v958 = vsub.s32 1, %v957
        %v959 = vrot.slane %v298, %v958
        %v960 = vlaneseq
        %v961 = vshrl.u32 %v960, 7
        %v962 = vsub.s32 2, %v961
        %v963 = vrot.slane %v298, %v962
        %v964 = vlaneseq
        %v965 = vshrl.u32 %v964, 7
        %v966 = vsub.s32 3, %v965
        %v967 = vrot.slane %v298, %v966
        %v968 = vlaneseq
        %v969 = vshrl.u32 %v968, 7
        %v970 = vsub.s32 4, %v969
        %v971 = vrot.slane %v298, %v970
        %v1217 = vunpack.c.l.b16 %v711
        %v1218 = vunpack.c.h.b16 %v711
        %v1219 = vunpack.c.l.b16 %v712
        %v1220 = vunpack.c.h.b16 %v712
        %v1221 = vunpack.c.l.b16 %v713
        %v1222 = vunpack.c.l.b16 %v714
        %v1223 = vunpack.c.h.b16 %v714
        %v1224 = vunpack.c.l.b16 %v715
        %v1225 = vunpack.c.h.b16 %v715
        %v1226 = vunpack.c.l.b16 %v716
        %v1227 = vunpack.c.l.b16 %v717
        %v1228 = vunpack.c.h.b16 %v717
        %v1229 = vunpack.c.l.b16 %v718
        %v1230 = vunpack.c.h.b16 %v718
        %v1231 = vunpack.c.l.b16 %v719
        %v1232 = vunpack.c.l.b16 %v720
        %v1233 = vunpack.c.h.b16 %v720
        %v1234 = vunpack.c.l.b16 %v721
        %v1235 = vunpack.c.h.b16 %v721
        %v1236 = vunpack.c.l.b16 %v722
        %v1237 = vunpack.c.l.b16 %v723
        %v1238 = vunpack.c.h.b16 %v723
        %v1239 = vunpack.c.l.b16 %v724
        %v1240 = vunpack.c.h.b16 %v724
        %v1241 = vunpack.c.l.b16 %v725
        %v1242 = vunpack.c.l.b16 %v726
        %v1243 = vunpack.c.h.b16 %v726
        %v1244 = vunpack.c.l.b16 %v727
        %v1245 = vunpack.c.h.b16 %v727
        %v1246 = vunpack.c.l.b16 %v728
        %v1247 = vunpack.c.l.b16 %v729
        %v1248 = vunpack.c.h.b16 %v729
        %v1249 = vunpack.c.l.b16 %v730
        %v1250 = vunpack.c.h.b16 %v730
        %v1251 = vunpack.c.l.b16 %v731
        %v1252 = vunpack.c.l.b16 %v732
        %v1253 = vunpack.c.h.b16 %v732
        %v1254 = vunpack.c.l.b16 %v733
        %v1255 = vunpack.c.h.b16 %v733
        %v1256 = vunpack.c.l.b16 %v734
        %v1257 = vunpack.c.l.b16 %v735
        %v1258 = vunpack.c.h.b16 %v735
        %v1259 = vunpack.c.l.b16 %v736
        %v1260 = vunpack.c.h.b16 %v736
        %v1261 = vunpack.c.l.b16 %v737
        %v1262 = vunpack.c.l.b16 %v738
        %v1263 = vunpack.c.h.b16 %v738
        %v1264 = vunpack.c.l.b16 %v739
        %v1265 = vunpack.c.h.b16 %v739
        %v1266 = vunpack.c.l.b16 %v740
        %v1267 = vunpack.c.l.b16 %v741
        %v1268 = vunpack.c.h.b16 %v741
        %v1269 = vunpack.c.l.b16 %v742
        %v1270 = vunpack.c.h.b16 %v742
        %v1271 = vunpack.c.l.b16 %v743
        %v1272 = vunpack.c.l.b16 %v744
        %v1273 = vunpack.c.h.b16 %v744
        %v1274 = vunpack.c.l.b16 %v745
        %v1275 = vunpack.c.h.b16 %v745
        %v1276 = vunpack.c.l.b16 %v746
        %v1277 = vunpack.c.l.b16 %v747
        %v1278 = vunpack.c.h.b16 %v747
        %v1279 = vunpack.c.l.b16 %v748
        %v1280 = vunpack.c.h.b16 %v748
        %v1281 = vunpack.c.l.b16 %v749
        %v1282 = vunpack.c.l.b16 %v750
        %v1283 = vunpack.c.h.b16 %v750
        %v1284 = vunpack.c.l.b16 %v751
        %v1285 = vunpack.c.h.b16 %v751
        %v1286 = vunpack.c.l.b16 %v752
        %v1287 = vunpack.c.l.b16 %v753
        %v1288 = vunpack.c.h.b16 %v753
        %v1289 = vunpack.c.l.b16 %v754
        %v1290 = vunpack.c.h.b16 %v754
        %v1291 = vunpack.c.l.b16 %v755
        %v1292 = vunpack.c.l.b16 %v756
        %v1293 = vunpack.c.h.b16 %v756
        %v1294 = vunpack.c.l.b16 %v757
        %v1295 = vunpack.c.h.b16 %v757
        %v1296 = vunpack.c.l.b16 %v758
        %v1297 = vunpack.c.l.b16 %v759
        %v1298 = vunpack.c.h.b16 %v759
        %v1299 = vunpack.c.l.b16 %v760
        %v1300 = vunpack.c.h.b16 %v760
        %v1301 = vunpack.c.l.b16 %v761
        %v1302 = vunpack.c.l.b16 %v762
        %v1303 = vunpack.c.h.b16 %v762
        %v1304 = vunpack.c.l.b16 %v763
        %v1305 = vunpack.c.h.b16 %v763
        %v1306 = vunpack.c.l.b16 %v764
        %v1307 = vunpack.c.l.b16 %v765
        %v1308 = vunpack.c.h.b16 %v765
        %v1309 = vunpack.c.l.b16 %v766
        %v1310 = vunpack.c.h.b16 %v766
        %v1311 = vunpack.c.l.b16 %v767
        %v1312 = vunpack.c.l.b16 %v768
        %v1313 = vunpack.c.h.b16 %v768
        %v1314 = vunpack.c.l.b16 %v769
        %v1315 = vunpack.c.h.b16 %v769
        %v1316 = vunpack.c.l.b16 %v770
        %v1317 = vunpack.c.l.b16 %v771
        %v1318 = vunpack.c.h.b16 %v771
        %v1319 = vunpack.c.l.b16 %v772
        %v1320 = vunpack.c.h.b16 %v772
        %v1321 = vunpack.c.l.b16 %v773
        %v1322 = vunpack.c.l.b16 %v774
        %v1323 = vunpack.c.h.b16 %v774
        %v1324 = vunpack.c.l.b16 %v775
        %v1325 = vunpack.c.h.b16 %v775
        %v1326 = vunpack.c.l.b16 %v776
        %v1327 = vunpack.c.l.b16 %v777
        %v1328 = vunpack.c.h.b16 %v777
        %v1329 = vunpack.c.l.b16 %v778
        %v1330 = vunpack.c.h.b16 %v778
        %v1331 = vunpack.c.l.b16 %v779
        %v1332 = vunpack.c.l.b16 %v780
        %v1333 = vunpack.c.h.b16 %v780
        %v1334 = vunpack.c.l.b16 %v781
        %v1335 = vunpack.c.h.b16 %v781
        %v1336 = vunpack.c.l.b16 %v782
        %v1337 = vunpack.c.l.b16 %v783
        %v1338 = vunpack.c.h.b16 %v783
        %v1339 = vunpack.c.l.b16 %v784
        %v1340 = vunpack.c.h.b16 %v784
        %v1341 = vunpack.c.l.b16 %v785
        %v1342 = vunpack.c.l.b16 %v786
        %v1343 = vunpack.c.h.b16 %v786
        %v1344 = vunpack.c.l.b16 %v787
        %v1345 = vunpack.c.h.b16 %v787
        %v1346 = vunpack.c.l.b16 %v788
        %v1347 = vunpack.c.l.b16 %v789
        %v1348 = vunpack.c.h.b16 %v789
        %v1349 = vunpack.c.l.b16 %v790
        %v1350 = vunpack.c.h.b16 %v790
        %v1351 = vunpack.c.l.b16 %v791
        %v1352 = vunpack.c.l.b16 %v792
        %v1353 = vunpack.c.h.b16 %v792
        %v1354 = vunpack.c.l.b16 %v793
        %v1355 = vunpack.c.h.b16 %v793
        %v1356 = vunpack.c.l.b16 %v794
        %v1357 = vunpack.c.l.b16 %v795
        %v1358 = vunpack.c.h.b16 %v795
        %v1359 = vunpack.c.l.b16 %v796
        %v1360 = vunpack.c.h.b16 %v796
        %v1361 = vunpack.c.l.b16 %v797
        %v1362 = vunpack.c.l.b16 %v798
        %v1363 = vunpack.c.h.b16 %v798
        %v1364 = vunpack.c.l.b16 %v799
        %v1365 = vunpack.c.h.b16 %v799
        %v1366 = vunpack.c.l.b16 %v800
        %v1367 = vunpack.c.l.b16 %v801
        %v1368 = vunpack.c.h.b16 %v801
        %v1369 = vunpack.c.l.b16 %v802
        %v1370 = vunpack.c.h.b16 %v802
        %v1371 = vunpack.c.l.b16 %v803
        %v1372 = vunpack.c.l.b16 %v804
        %v1373 = vunpack.c.h.b16 %v804
        %v1374 = vunpack.c.l.b16 %v805
        %v1375 = vunpack.c.h.b16 %v805
        %v1376 = vunpack.c.l.b16 %v806
        %v1377 = vunpack.c.l.b16 %v807
        %v1378 = vunpack.c.h.b16 %v807
        %v1379 = vunpack.c.l.b16 %v808
        %v1380 = vunpack.c.h.b16 %v808
        %v1381 = vunpack.c.l.b16 %v809
        %v1382 = vunpack.c.l.b16 %v810
        %v1383 = vunpack.c.h.b16 %v810
        %v1384 = vunpack.c.l.b16 %v811
        %v1385 = vunpack.c.h.b16 %v811
        %v1386 = vunpack.c.l.b16 %v812
        %v1387 = vunpack.c.l.b16 %v813
        %v1388 = vunpack.c.h.b16 %v813
        %v1389 = vunpack.c.l.b16 %v814
        %v1390 = vunpack.c.h.b16 %v814
        %v1391 = vunpack.c.l.b16 %v815
        %v1392 = vunpack.c.l.b16 %v816
        %v1393 = vunpack.c.h.b16 %v816
        %v1394 = vunpack.c.l.b16 %v817
        %v1395 = vunpack.c.h.b16 %v817
        %v1396 = vunpack.c.l.b16 %v818
        %v1397 = vunpack.c.l.b16 %v819
        %v1398 = vunpack.c.h.b16 %v819
        %v1399 = vunpack.c.l.b16 %v820
        %v1400 = vunpack.c.h.b16 %v820
        %v1401 = vunpack.c.l.b16 %v821
        %v1402 = vunpack.c.l.b16 %v822
        %v1403 = vunpack.c.h.b16 %v822
        %v1404 = vunpack.c.l.b16 %v823
        %v1405 = vunpack.c.h.b16 %v823
        %v1406 = vunpack.c.l.b16 %v824
        %v1407 = vunpack.c.l.b16 %v825
        %v1408 = vunpack.c.h.b16 %v825
        %v1409 = vunpack.c.l.b16 %v826
        %v1410 = vunpack.c.h.b16 %v826
        %v1411 = vunpack.c.l.b16 %v827
        %v1412 = vunpack.c.l.b16 %v828
        %v1413 = vunpack.c.h.b16 %v828
        %v1414 = vunpack.c.l.b16 %v829
        %v1415 = vunpack.c.h.b16 %v829
        %v1416 = vunpack.c.l.b16 %v830
        %v1417 = vunpack.c.l.b16 %v831
        %v1418 = vunpack.c.h.b16 %v831
        %v1419 = vunpack.c.l.b16 %v832
        %v1420 = vunpack.c.h.b16 %v832
        %v1421 = vunpack.c.l.b16 %v833
        %v1422 = vunpack.c.l.b16 %v834
        %v1423 = vunpack.c.h.b16 %v834
        %v1424 = vunpack.c.l.b16 %v835
        %v1425 = vunpack.c.h.b16 %v835
        %v1426 = vunpack.c.l.b16 %v836
        %v1427 = vunpack.c.l.b16 %v837
        %v1428 = vunpack.c.h.b16 %v837
        %v1429 = vunpack.c.l.b16 %v838
        %v1430 = vunpack.c.h.b16 %v838
        %v1431 = vunpack.c.l.b16 %v839
        %v1432 = vunpack.c.l.b16 %v840
        %v1433 = vunpack.c.h.b16 %v840
        %v1434 = vunpack.c.l.b16 %v841
        %v1435 = vunpack.c.h.b16 %v841
        %v1436 = vunpack.c.l.b16 %v842
        %v1437 = vunpack.c.l.b16 %v843
        %v1438 = vunpack.c.h.b16 %v843
        %v1439 = vunpack.c.l.b16 %v844
        %v1440 = vunpack.c.h.b16 %v844
        %v1441 = vunpack.c.l.b16 %v845
        %v1442 = vunpack.c.l.b16 %v846
        %v1443 = vunpack.c.h.b16 %v846
        %v1444 = vunpack.c.l.b16 %v847
        %v1445 = vunpack.c.h.b16 %v847
        %v1446 = vunpack.c.l.b16 %v848
        %v1447 = vunpack.c.l.b16 %v849
        %v1448 = vunpack.c.h.b16 %v849
        %v1449 = vunpack.c.l.b16 %v850
        %v1450 = vunpack.c.h.b16 %v850
        %v1451 = vunpack.c.l.b16 %v851
        %v1452 = vunpack.c.l.b16 %v852
        %v1453 = vunpack.c.h.b16 %v852
        %v1454 = vunpack.c.l.b16 %v853
        %v1455 = vunpack.c.h.b16 %v853
        %v1456 = vunpack.c.l.b16 %v854
        %v1457 = vunpack.c.l.b16 %v855
        %v1458 = vunpack.c.h.b16 %v855
        %v1459 = vunpack.c.l.b16 %v856
        %v1460 = vunpack.c.h.b16 %v856
        %v1461 = vunpack.c.l.b16 %v857
        %v1462 = vunpack.c.l.b16 %v858
        %v1463 = vunpack.c.h.b16 %v858
        %v1464 = vunpack.c.l.b16 %v859
        %v1465 = vunpack.c.h.b16 %v859
        %v1466 = vunpack.c.l.b16 %v860
        %v1467 = vunpack.c.l.b16 %v861
        %v1468 = vunpack.c.h.b16 %v861
        %v1469 = vunpack.c.l.b16 %v862
        %v1470 = vunpack.c.h.b16 %v862
        %v1471 = vunpack.c.l.b16 %v863
        %v1472 = vunpack.c.l.b16 %v864
        %v1473 = vunpack.c.h.b16 %v864
        %v1474 = vunpack.c.l.b16 %v865
        %v1475 = vunpack.c.h.b16 %v865
        %v1476 = vunpack.c.l.b16 %v866
        %v1477 = vunpack.c.l.b16 %v867
        %v1478 = vunpack.c.h.b16 %v867
        %v1479 = vunpack.c.l.b16 %v868
        %v1480 = vunpack.c.h.b16 %v868
        %v1481 = vunpack.c.l.b16 %v869
        %v1482 = vunpack.c.l.b16 %v870
        %v1483 = vunpack.c.h.b16 %v870
        %v1484 = vunpack.c.l.b16 %v871
        %v1485 = vunpack.c.h.b16 %v871
        %v1486 = vunpack.c.l.b16 %v872
        %v1487 = vunpack.c.l.b16 %v873
        %v1488 = vunpack.c.h.b16 %v873
        %v1489 = vunpack.c.l.b16 %v874
        %v1490 = vunpack.c.h.b16 %v874
        %v1491 = vunpack.c.l.b16 %v875
        %v1492 = vunpack.c.l.b16 %v876
        %v1493 = vunpack.c.h.b16 %v876
        %v1494 = vunpack.c.l.b16 %v877
        %v1495 = vunpack.c.h.b16 %v877
        %v1496 = vunpack.c.l.b16 %v878
        %v1497 = vunpack.c.l.b16 %v879
        %v1498 = vunpack.c.h.b16 %v879
        %v1499 = vunpack.c.l.b16 %v880
        %v1500 = vunpack.c.h.b16 %v880
        %v1501 = vunpack.c.l.b16 %v881
        %v1502 = vunpack.c.l.b16 %v882
        %v1503 = vunpack.c.h.b16 %v882
        %v1504 = vunpack.c.l.b16 %v883
        %v1505 = vunpack.c.h.b16 %v883
        %v1506 = vunpack.c.l.b16 %v884
        %v1507 = vunpack.c.l.b16 %v885
        %v1508 = vunpack.c.h.b16 %v885
        %v1509 = vunpack.c.l.b16 %v886
        %v1510 = vunpack.c.h.b16 %v886
        %v1511 = vunpack.c.l.b16 %v887
        %v1512 = vunpack.c.l.b16 %v888
        %v1513 = vunpack.c.h.b16 %v888
        %v1514 = vunpack.c.l.b16 %v889
        %v1515 = vunpack.c.h.b16 %v889
        %v1516 = vunpack.c.l.b16 %v890
        %v1517 = vunpack.c.l.b16 %v891
        %v1518 = vunpack.c.h.b16 %v891
        %v1519 = vunpack.c.l.b16 %v892
        %v1520 = vunpack.c.h.b16 %v892
        %v1521 = vunpack.c.l.b16 %v893
        %v1522 = vunpack.c.l.b16 %v894
        %v1523 = vunpack.c.h.b16 %v894
        %v1524 = vunpack.c.l.b16 %v895
        %v1525 = vunpack.c.h.b16 %v895
        %v1526 = vunpack.c.l.b16 %v896
        %v1527 = vunpack.c.l.b16 %v897
        %v1528 = vunpack.c.h.b16 %v897
        %v1529 = vunpack.c.l.b16 %v898
        %v1530 = vunpack.c.h.b16 %v898
        %v1531 = vunpack.c.l.b16 %v899
        %v1532 = vunpack.c.l.b16 %v900
        %v1533 = vunpack.c.h.b16 %v900
        %v1534 = vunpack.c.l.b16 %v901
        %v1535 = vunpack.c.h.b16 %v901
        %v1536 = vunpack.c.l.b16 %v902
        %v1537 = vunpack.c.l.b16 %v903
        %v1538 = vunpack.c.h.b16 %v903
        %v1539 = vunpack.c.l.b16 %v904
        %v1540 = vunpack.c.h.b16 %v904
        %v1541 = vunpack.c.l.b16 %v905
        %v1542 = vunpack.c.l.b16 %v906
        %v1543 = vunpack.c.h.b16 %v906
        %v1544 = vunpack.c.l.b16 %v907
        %v1545 = vunpack.c.h.b16 %v907
        %v1546 = vunpack.c.l.b16 %v908
        %v1547 = vunpack.c.l.b16 %v909
        %v1548 = vunpack.c.h.b16 %v909
        %v1549 = vunpack.c.l.b16 %v910
        %v1550 = vunpack.c.h.b16 %v910
        %v1551 = vunpack.c.l.b16 %v911
        %v1552 = vunpack.c.l.b16 %v912
        %v1553 = vunpack.c.h.b16 %v912
        %v1554 = vunpack.c.l.b16 %v913
        %v1555 = vunpack.c.h.b16 %v913
        %v1556 = vunpack.c.l.b16 %v914
        %v1557 = vunpack.c.l.b16 %v915
        %v1558 = vunpack.c.h.b16 %v915
        %v1559 = vunpack.c.l.b16 %v916
        %v1560 = vunpack.c.h.b16 %v916
        %v1561 = vunpack.c.l.b16 %v917
        %v1562 = vunpack.c.l.b16 %v918
        %v1563 = vunpack.c.h.b16 %v918
        %v1564 = vunpack.c.l.b16 %v919
        %v1565 = vunpack.c.h.b16 %v919
        %v1566 = vunpack.c.l.b16 %v920
        %v1567 = vunpack.c.l.b16 %v921
        %v1568 = vunpack.c.h.b16 %v921
        %v1569 = vunpack.c.l.b16 %v922
        %v1570 = vunpack.c.h.b16 %v922
        %v1571 = vunpack.c.l.b16 %v923
        %v1572 = vunpack.c.l.b16 %v924
        %v1573 = vunpack.c.h.b16 %v924
        %v1574 = vunpack.c.l.b16 %v925
        %v1575 = vunpack.c.h.b16 %v925
        %v1576 = vunpack.c.l.b16 %v926
        %v1577 = vunpack.c.l.b16 %v927
        %v1578 = vunpack.c.h.b16 %v927
        %v1579 = vunpack.c.l.b16 %v928
        %v1580 = vunpack.c.h.b16 %v928
        %v1581 = vunpack.c.l.b16 %v929
        %v1582 = vunpack.c.l.b16 %v930
        %v1583 = vunpack.c.h.b16 %v930
        %v1584 = vunpack.c.l.b16 %v931
        %v1585 = vunpack.c.h.b16 %v931
        %v1586 = vunpack.c.l.b16 %v932
        %v1587 = vunpack.c.l.b16 %v933
        %v1588 = vunpack.c.h.b16 %v933
        %v1589 = vunpack.c.l.b16 %v934
        %v1590 = vunpack.c.h.b16 %v934
        %v1591 = vunpack.c.l.b16 %v935
        %v1592 = vunpack.c.l.b16 %v936
        %v1593 = vunpack.c.h.b16 %v936
        %v1594 = vunpack.c.l.b16 %v937
        %v1595 = vunpack.c.h.b16 %v937
        %v1596 = vunpack.c.l.b16 %v938
        %v1597 = vunpack.c.l.b16 %v939
        %v1598 = vunpack.c.h.b16 %v939
        %v1599 = vunpack.c.l.b16 %v940
        %v1600 = vunpack.c.h.b16 %v940
        %v1601 = vunpack.c.l.b16 %v941
        %v1602 = vunpack.c.l.b16 %v942
        %v1603 = vunpack.c.h.b16 %v942
        %v1604 = vunpack.c.l.b16 %v943
        %v1605 = vunpack.c.h.b16 %v943
        %v1606 = vunpack.c.l.b16 %v944
        %v1607 = vunpack.c.l.b16 %v945
        %v1608 = vunpack.c.h.b16 %v945
        %v1609 = vunpack.c.l.b16 %v946
        %v1610 = vunpack.c.h.b16 %v946
        %v1611 = vunpack.c.l.b16 %v947
        %v1612 = vunpack.c.l.b16 %v948
        %v1613 = vunpack.c.h.b16 %v948
        %v1614 = vunpack.c.l.b16 %v949
        %v1615 = vunpack.c.h.b16 %v949
        %v1616 = vunpack.c.l.b16 %v950
        %v1617 = vpack.c.b16 %v1222, %v1217
        %v1618 = vpack.c.b16 %v1223, %v1218
        %v1619 = vpack.c.b16 %v1224, %v1219
        %v1620 = vpack.c.b16 %v1225, %v1220
        %v1621 = vpack.c.b16 %v1226, %v1221
        %v1622 = vpack.c.b16 %v1232, %v1227
        %v1623 = vpack.c.b16 %v1233, %v1228
        %v1624 = vpack.c.b16 %v1234, %v1229
        %v1625 = vpack.c.b16 %v1235, %v1230
        %v1626 = vpack.c.b16 %v1236, %v1231
        %v1627 = vpack.c.b16 %v1242, %v1237
        %v1628 = vpack.c.b16 %v1243, %v1238
        %v1629 = vpack.c.b16 %v1244, %v1239
        %v1630 = vpack.c.b16 %v1245, %v1240
        %v1631 = vpack.c.b16 %v1246, %v1241
        %v1632 = vpack.c.b16 %v1252, %v1247
        %v1633 = vpack.c.b16 %v1253, %v1248
        %v1634 = vpack.c.b16 %v1254, %v1249
        %v1635 = vpack.c.b16 %v1255, %v1250
        %v1636 = vpack.c.b16 %v1256, %v1251
        %v1637 = vpack.c.b16 %v1262, %v1257
        %v1638 = vpack.c.b16 %v1263, %v1258
        %v1639 = vpack.c.b16 %v1264, %v1259
        %v1640 = vpack.c.b16 %v1265, %v1260
        %v1641 = vpack.c.b16 %v1266, %v1261
        %v1642 = vpack.c.b16 %v1272, %v1267
        %v1643 = vpack.c.b16 %v1273, %v1268
        %v1644 = vpack.c.b16 %v1274, %v1269
        %v1645 = vpack.c.b16 %v1275, %v1270
        %v1646 = vpack.c.b16 %v1276, %v1271
        %v1647 = vpack.c.b16 %v1282, %v1277
        %v1648 = vpack.c.b16 %v1283, %v1278
        %v1649 = vpack.c.b16 %v1284, %v1279
        %v1650 = vpack.c.b16 %v1285, %v1280
        %v1651 = vpack.c.b16 %v1286, %v1281
        %v1652 = vpack.c.b16 %v1292, %v1287
        %v1653 = vpack.c.b16 %v1293, %v1288
        %v1654 = vpack.c.b16 %v1294, %v1289
        %v1655 = vpack.c.b16 %v1295, %v1290
        %v1656 = vpack.c.b16 %v1296, %v1291
        %v1657 = vpack.c.b16 %v1302, %v1297
        %v1658 = vpack.c.b16 %v1303, %v1298
        %v1659 = vpack.c.b16 %v1304, %v1299
        %v1660 = vpack.c.b16 %v1305, %v1300
        %v1661 = vpack.c.b16 %v1306, %v1301
        %v1662 = vpack.c.b16 %v1312, %v1307
        %v1663 = vpack.c.b16 %v1313, %v1308
        %v1664 = vpack.c.b16 %v1314, %v1309
        %v1665 = vpack.c.b16 %v1315, %v1310
        %v1666 = vpack.c.b16 %v1316, %v1311
        %v1667 = vpack.c.b16 %v1322, %v1317
        %v1668 = vpack.c.b16 %v1323, %v1318
        %v1669 = vpack.c.b16 %v1324, %v1319
        %v1670 = vpack.c.b16 %v1325, %v1320
        %v1671 = vpack.c.b16 %v1326, %v1321
        %v1672 = vpack.c.b16 %v1332, %v1327
        %v1673 = vpack.c.b16 %v1333, %v1328
        %v1674 = vpack.c.b16 %v1334, %v1329
        %v1675 = vpack.c.b16 %v1335, %v1330
        %v1676 = vpack.c.b16 %v1336, %v1331
        %v1677 = vpack.c.b16 %v1342, %v1337
        %v1678 = vpack.c.b16 %v1343, %v1338
        %v1679 = vpack.c.b16 %v1344, %v1339
        %v1680 = vpack.c.b16 %v1345, %v1340
        %v1681 = vpack.c.b16 %v1346, %v1341
        %v1682 = vpack.c.b16 %v1352, %v1347
        %v1683 = vpack.c.b16 %v1353, %v1348
        %v1684 = vpack.c.b16 %v1354, %v1349
        %v1685 = vpack.c.b16 %v1355, %v1350
        %v1686 = vpack.c.b16 %v1356, %v1351
        %v1687 = vpack.c.b16 %v1362, %v1357
        %v1688 = vpack.c.b16 %v1363, %v1358
        %v1689 = vpack.c.b16 %v1364, %v1359
        %v1690 = vpack.c.b16 %v1365, %v1360
        %v1691 = vpack.c.b16 %v1366, %v1361
        %v1692 = vpack.c.b16 %v1372, %v1367
        %v1693 = vpack.c.b16 %v1373, %v1368
        %v1694 = vpack.c.b16 %v1374, %v1369
        %v1695 = vpack.c.b16 %v1375, %v1370
        %v1696 = vpack.c.b16 %v1376, %v1371
        %v1697 = vpack.c.b16 %v1382, %v1377
        %v1698 = vpack.c.b16 %v1383, %v1378
        %v1699 = vpack.c.b16 %v1384, %v1379
        %v1700 = vpack.c.b16 %v1385, %v1380
        %v1701 = vpack.c.b16 %v1386, %v1381
        %v1702 = vpack.c.b16 %v1392, %v1387
        %v1703 = vpack.c.b16 %v1393, %v1388
        %v1704 = vpack.c.b16 %v1394, %v1389
        %v1705 = vpack.c.b16 %v1395, %v1390
        %v1706 = vpack.c.b16 %v1396, %v1391
        %v1707 = vpack.c.b16 %v1402, %v1397
        %v1708 = vpack.c.b16 %v1403, %v1398
        %v1709 = vpack.c.b16 %v1404, %v1399
        %v1710 = vpack.c.b16 %v1405, %v1400
        %v1711 = vpack.c.b16 %v1406, %v1401
        %v1712 = vpack.c.b16 %v1412, %v1407
        %v1713 = vpack.c.b16 %v1413, %v1408
        %v1714 = vpack.c.b16 %v1414, %v1409
        %v1715 = vpack.c.b16 %v1415, %v1410
        %v1716 = vpack.c.b16 %v1416, %v1411
        %v1717 = vpack.c.b16 %v1422, %v1417
        %v1718 = vpack.c.b16 %v1423, %v1418
        %v1719 = vpack.c.b16 %v1424, %v1419
        %v1720 = vpack.c.b16 %v1425, %v1420
        %v1721 = vpack.c.b16 %v1426, %v1421
        %v1722 = vpack.c.b16 %v1432, %v1427
        %v1723 = vpack.c.b16 %v1433, %v1428
        %v1724 = vpack.c.b16 %v1434, %v1429
        %v1725 = vpack.c.b16 %v1435, %v1430
        %v1726 = vpack.c.b16 %v1436, %v1431
        %v1727 = vpack.c.b16 %v1442, %v1437
        %v1728 = vpack.c.b16 %v1443, %v1438
        %v1729 = vpack.c.b16 %v1444, %v1439
        %v1730 = vpack.c.b16 %v1445, %v1440
        %v1731 = vpack.c.b16 %v1446, %v1441
        %v1732 = vpack.c.b16 %v1452, %v1447
        %v1733 = vpack.c.b16 %v1453, %v1448
        %v1734 = vpack.c.b16 %v1454, %v1449
        %v1735 = vpack.c.b16 %v1455, %v1450
        %v1736 = vpack.c.b16 %v1456, %v1451
        %v1737 = vpack.c.b16 %v1462, %v1457
        %v1738 = vpack.c.b16 %v1463, %v1458
        %v1739 = vpack.c.b16 %v1464, %v1459
        %v1740 = vpack.c.b16 %v1465, %v1460
        %v1741 = vpack.c.b16 %v1466, %v1461
        %v1742 = vpack.c.b16 %v1472, %v1467
        %v1743 = vpack.c.b16 %v1473, %v1468
        %v1744 = vpack.c.b16 %v1474, %v1469
        %v1745 = vpack.c.b16 %v1475, %v1470
        %v1746 = vpack.c.b16 %v1476, %v1471
        %v1747 = vpack.c.b16 %v1482, %v1477
        %v1748 = vpack.c.b16 %v1483, %v1478
        %v1749 = vpack.c.b16 %v1484, %v1479
        %v1750 = vpack.c.b16 %v1485, %v1480
        %v1751 = vpack.c.b16 %v1486, %v1481
        %v1752 = vpack.c.b16 %v1492, %v1487
        %v1753 = vpack.c.b16 %v1493, %v1488
        %v1754 = vpack.c.b16 %v1494, %v1489
        %v1755 = vpack.c.b16 %v1495, %v1490
        %v1756 = vpack.c.b16 %v1496, %v1491
        %v1757 = vpack.c.b16 %v1502, %v1497
        %v1758 = vpack.c.b16 %v1503, %v1498
        %v1759 = vpack.c.b16 %v1504, %v1499
        %v1760 = vpack.c.b16 %v1505, %v1500
        %v1761 = vpack.c.b16 %v1506, %v1501
        %v1762 = vpack.c.b16 %v1512, %v1507
        %v1763 = vpack.c.b16 %v1513, %v1508
        %v1764 = vpack.c.b16 %v1514, %v1509
        %v1765 = vpack.c.b16 %v1515, %v1510
        %v1766 = vpack.c.b16 %v1516, %v1511
        %v1767 = vpack.c.b16 %v1522, %v1517
        %v1768 = vpack.c.b16 %v1523, %v1518
        %v1769 = vpack.c.b16 %v1524, %v1519
        %v1770 = vpack.c.b16 %v1525, %v1520
        %v1771 = vpack.c.b16 %v1526, %v1521
        %v1772 = vpack.c.b16 %v1532, %v1527
        %v1773 = vpack.c.b16 %v1533, %v1528
        %v1774 = vpack.c.b16 %v1534, %v1529
        %v1775 = vpack.c.b16 %v1535, %v1530
        %v1776 = vpack.c.b16 %v1536, %v1531
        %v1777 = vpack.c.b16 %v1542, %v1537
        %v1778 = vpack.c.b16 %v1543, %v1538
        %v1779 = vpack.c.b16 %v1544, %v1539
        %v1780 = vpack.c.b16 %v1545, %v1540
        %v1781 = vpack.c.b16 %v1546, %v1541
        %v1782 = vpack.c.b16 %v1552, %v1547
        %v1783 = vpack.c.b16 %v1553, %v1548
        %v1784 = vpack.c.b16 %v1554, %v1549
        %v1785 = vpack.c.b16 %v1555, %v1550
        %v1786 = vpack.c.b16 %v1556, %v1551
        %v1787 = vpack.c.b16 %v1562, %v1557
        %v1788 = vpack.c.b16 %v1563, %v1558
        %v1789 = vpack.c.b16 %v1564, %v1559
        %v1790 = vpack.c.b16 %v1565, %v1560
        %v1791 = vpack.c.b16 %v1566, %v1561
        %v1792 = vpack.c.b16 %v1572, %v1567
        %v1793 = vpack.c.b16 %v1573, %v1568
        %v1794 = vpack.c.b16 %v1574, %v1569
        %v1795 = vpack.c.b16 %v1575, %v1570
        %v1796 = vpack.c.b16 %v1576, %v1571
        %v1797 = vpack.c.b16 %v1582, %v1577
        %v1798 = vpack.c.b16 %v1583, %v1578
        %v1799 = vpack.c.b16 %v1584, %v1579
        %v1800 = vpack.c.b16 %v1585, %v1580
        %v1801 = vpack.c.b16 %v1586, %v1581
        %v1802 = vpack.c.b16 %v1592, %v1587
        %v1803 = vpack.c.b16 %v1593, %v1588
        %v1804 = vpack.c.b16 %v1594, %v1589
        %v1805 = vpack.c.b16 %v1595, %v1590
        %v1806 = vpack.c.b16 %v1596, %v1591
        %v1807 = vpack.c.b16 %v1602, %v1597
        %v1808 = vpack.c.b16 %v1603, %v1598
        %v1809 = vpack.c.b16 %v1604, %v1599
        %v1810 = vpack.c.b16 %v1605, %v1600
        %v1811 = vpack.c.b16 %v1606, %v1601
        %v1812 = vpack.c.b16 %v1612, %v1607
        %v1813 = vpack.c.b16 %v1613, %v1608
        %v1814 = vpack.c.b16 %v1614, %v1609
        %v1815 = vpack.c.b16 %v1615, %v1610
        %v1816 = vpack.c.b16 %v1616, %v1611
        %2017 = vmatprep.subr.bf16.mxu0 %v1618
        %2018 = vmatpush1.bf16.msra.mxu0 %v1617
        %2019 = vmatprep.subr.bf16.mxu0 %v1623
        %2020 = vmatpush1.bf16.msra.mxu0 %v1622
        %2021 = vmatprep.subr.bf16.mxu0 %v1628
        %2022 = vmatpush1.bf16.msra.mxu0 %v1627
        %2023 = vmatprep.subr.bf16.mxu0 %v1633
        %2024 = vmatpush1.bf16.msra.mxu0 %v1632
        %2025 = vmatprep.subr.bf16.mxu0 %v1638
        %2026 = vmatpush1.bf16.msra.mxu0 %v1637
        %2027 = vmatprep.subr.bf16.mxu0 %v1643
        %2028 = vmatpush1.bf16.msra.mxu0 %v1642
        %2029 = vmatprep.subr.bf16.mxu0 %v1648
        %2030 = vmatpush1.bf16.msra.mxu0 %v1647
        %2031 = vmatprep.subr.bf16.mxu0 %v1653
        %2032 = vmatpush1.bf16.msra.mxu0 %v1652
        %2033 = vmatprep.subr.bf16.mxu0 %v1658
        %2034 = vmatpush1.bf16.msra.mxu0 %v1657
        %2035 = vmatprep.subr.bf16.mxu0 %v1663
        %2036 = vmatpush1.bf16.msra.mxu0 %v1662
        %2037 = vmatprep.subr.bf16.mxu0 %v1668
        %2038 = vmatpush1.bf16.msra.mxu0 %v1667
        %2039 = vmatprep.subr.bf16.mxu0 %v1673
        %2040 = vmatpush1.bf16.msra.mxu0 %v1672
        %2041 = vmatprep.subr.bf16.mxu0 %v1678
        %2042 = vmatpush1.bf16.msra.mxu0 %v1677
        %2043 = vmatprep.subr.bf16.mxu0 %v1683
        %2044 = vmatpush1.bf16.msra.mxu0 %v1682
        %2045 = vmatprep.subr.bf16.mxu0 %v1688
        %2046 = vmatpush1.bf16.msra.mxu0 %v1687
        %2047 = vmatprep.subr.bf16.mxu0 %v1693
        %2048 = vmatpush1.bf16.msra.mxu0 %v1692
        %2049 = vmatprep.mubr.bf16.mxu0 %v707
        %2050 = vmatmul.mubr.bf16.gmra.mrb[0].mxu0 %v706
        %v2051 = vpop.f32.mrb[0].mxu0
        %v2052 = vadd.f32 %v955, %v2051
        %v2053 = vpop.f32.mrb[0].mxu0
        %v2054 = vadd.f32 %v959, %v2053
        %v2055 = vpop.f32.mrb[0].mxu0
        %v2056 = vpop.f32.mrb[0].mxu0
        %2057 = vdwg.mxu0
        %2058 = vmatprep.subr.bf16.mxu0 %v1698
        %2059 = vmatpush1.bf16.msra.mxu0 %v1697
        %2060 = vmatprep.subr.bf16.mxu0 %v1703
        %2061 = vmatpush1.bf16.msra.mxu0 %v1702
        %2062 = vmatprep.subr.bf16.mxu0 %v1708
        %2063 = vmatpush1.bf16.msra.mxu0 %v1707
        %2064 = vmatprep.subr.bf16.mxu0 %v1713
        %2065 = vmatpush1.bf16.msra.mxu0 %v1712
        %2066 = vmatprep.subr.bf16.mxu0 %v1718
        %2067 = vmatpush1.bf16.msra.mxu0 %v1717
        %2068 = vmatprep.subr.bf16.mxu0 %v1723
        %2069 = vmatpush1.bf16.msra.mxu0 %v1722
        %2070 = vmatprep.subr.bf16.mxu0 %v1728
        %2071 = vmatpush1.bf16.msra.mxu0 %v1727
        %2072 = vmatprep.subr.bf16.mxu0 %v1733
        %2073 = vmatpush1.bf16.msra.mxu0 %v1732
        %2074 = vmatprep.subr.bf16.mxu0 %v1738
        %2075 = vmatpush1.bf16.msra.mxu0 %v1737
        %2076 = vmatprep.subr.bf16.mxu0 %v1743
        %2077 = vmatpush1.bf16.msra.mxu0 %v1742
        %2078 = vmatprep.subr.bf16.mxu0 %v1748
        %2079 = vmatpush1.bf16.msra.mxu0 %v1747
        %2080 = vmatprep.subr.bf16.mxu0 %v1753
        %2081 = vmatpush1.bf16.msra.mxu0 %v1752
        %2082 = vmatprep.subr.bf16.mxu0 %v1758
        %2083 = vmatpush1.bf16.msra.mxu0 %v1757
        %2084 = vmatprep.subr.bf16.mxu0 %v1763
        %2085 = vmatpush1.bf16.msra.mxu0 %v1762
        %2086 = vmatprep.subr.bf16.mxu0 %v1768
        %2087 = vmatpush1.bf16.msra.mxu0 %v1767
        %2088 = vmatprep.subr.bf16.mxu0 %v1773
        %2089 = vmatpush1.bf16.msra.mxu0 %v1772
        %2090 = vmatprep.mubr.bf16.mxu0 %v709
        %2091 = vmatmul.mubr.bf16.gmra.mrb[0].mxu0 %v708
        %v2092 = vpop.f32.mrb[0].mxu0
        %v2093 = vadd.f32 %v2052, %v2092
        %v2094 = vpop.f32.mrb[0].mxu0
        %v2095 = vadd.f32 %v2054, %v2094
        %v2096 = vpop.f32.mrb[0].mxu0
        %v2097 = vpop.f32.mrb[0].mxu0
        %2098 = vdwg.mxu0
        %2099 = vmatprep.subr.bf16.mxu0 %v1778
        %2100 = vmatpush1.bf16.msra.mxu0 %v1777
        %2101 = vmatprep.subr.bf16.mxu0 %v1783
        %2102 = vmatpush1.bf16.msra.mxu0 %v1782
        %2103 = vmatprep.subr.bf16.mxu0 %v1788
        %2104 = vmatpush1.bf16.msra.mxu0 %v1787
        %2105 = vmatprep.subr.bf16.mxu0 %v1793
        %2106 = vmatpush1.bf16.msra.mxu0 %v1792
        %2107 = vmatprep.subr.bf16.mxu0 %v1798
        %2108 = vmatpush1.bf16.msra.mxu0 %v1797
        %2109 = vmatprep.subr.bf16.mxu0 %v1803
        %2110 = vmatpush1.bf16.msra.mxu0 %v1802
        %2111 = vmatprep.subr.bf16.mxu0 %v1808
        %2112 = vmatpush1.bf16.msra.mxu0 %v1807
        %2113 = vmatprep.subr.bf16.mxu0 %v1813
        %2114 = vmatpush1.bf16.msra.mxu0 %v1812
        %2115 = vmatprep.subr.bf16.mxu0 0
        %2116 = vmatpush1.bf16.msra.mxu0 0
        %2117 = vmatprep.subr.bf16.mxu0 0
        %2118 = vmatpush1.bf16.msra.mxu0 0
        %2119 = vmatprep.subr.bf16.mxu0 0
        %2120 = vmatpush1.bf16.msra.mxu0 0
        %2121 = vmatprep.subr.bf16.mxu0 0
        %2122 = vmatpush1.bf16.msra.mxu0 0
        %2123 = vmatprep.subr.bf16.mxu0 0
        %2124 = vmatpush1.bf16.msra.mxu0 0
        %2125 = vmatprep.subr.bf16.mxu0 0
        %2126 = vmatpush1.bf16.msra.mxu0 0
        %2127 = vmatprep.subr.bf16.mxu0 0
        %2128 = vmatpush1.bf16.msra.mxu0 0
        %2129 = vmatprep.subr.bf16.mxu0 0
        %2130 = vmatpush1.bf16.msra.mxu0 0
        %2131 = vmatprep.mubr.bf16.mxu0 0
        %2132 = vmatmul.mubr.bf16.gmra.mrb[0].mxu0 %v710
        %v2133 = vpop.f32.mrb[0].mxu0
        %v2134 = vadd.f32 %v2093, %v2133
        %v2135 = vpop.f32.mrb[0].mxu0
        %v2136 = vadd.f32 %v2095, %v2135
        %v2137 = vpop.f32.mrb[0].mxu0
        %v2138 = vpop.f32.mrb[0].mxu0
        %2139 = vdwg.mxu0
        %2140 = vmatprep.subr.bf16.mxu0 %v1620
        %2141 = vmatpush1.bf16.msra.mxu0 %v1619
        %2142 = vmatprep.subr.bf16.mxu0 %v1625
        %2143 = vmatpush1.bf16.msra.mxu0 %v1624
        %2144 = vmatprep.subr.bf16.mxu0 %v1630
        %2145 = vmatpush1.bf16.msra.mxu0 %v1629
        %2146 = vmatprep.subr.bf16.mxu0 %v1635
        %2147 = vmatpush1.bf16.msra.mxu0 %v1634
        %2148 = vmatprep.subr.bf16.mxu0 %v1640
        %2149 = vmatpush1.bf16.msra.mxu0 %v1639
        %2150 = vmatprep.subr.bf16.mxu0 %v1645
        %2151 = vmatpush1.bf16.msra.mxu0 %v1644
        %2152 = vmatprep.subr.bf16.mxu0 %v1650
        %2153 = vmatpush1.bf16.msra.mxu0 %v1649
        %2154 = vmatprep.subr.bf16.mxu0 %v1655
        %2155 = vmatpush1.bf16.msra.mxu0 %v1654
        %2156 = vmatprep.subr.bf16.mxu0 %v1660
        %2157 = vmatpush1.bf16.msra.mxu0 %v1659
        %2158 = vmatprep.subr.bf16.mxu0 %v1665
        %2159 = vmatpush1.bf16.msra.mxu0 %v1664
        %2160 = vmatprep.subr.bf16.mxu0 %v1670
        %2161 = vmatpush1.bf16.msra.mxu0 %v1669
        %2162 = vmatprep.subr.bf16.mxu0 %v1675
        %2163 = vmatpush1.bf16.msra.mxu0 %v1674
        %2164 = vmatprep.subr.bf16.mxu0 %v1680
        %2165 = vmatpush1.bf16.msra.mxu0 %v1679
        %2166 = vmatprep.subr.bf16.mxu0 %v1685
        %2167 = vmatpush1.bf16.msra.mxu0 %v1684
        %2168 = vmatprep.subr.bf16.mxu0 %v1690
        %2169 = vmatpush1.bf16.msra.mxu0 %v1689
        %2170 = vmatprep.subr.bf16.mxu0 %v1695
        %2171 = vmatpush1.bf16.msra.mxu0 %v1694
        %2172 = vmatprep.mubr.bf16.mxu0 %v707
        %2173 = vmatmul.mubr.bf16.gmra.mrb[0].mxu0 %v706
        %v2174 = vpop.f32.mrb[0].mxu0
        %v2175 = vadd.f32 %v963, %v2174
        %v2176 = vpop.f32.mrb[0].mxu0
        %v2177 = vadd.f32 %v967, %v2176
        %v2178 = vpop.f32.mrb[0].mxu0
        %v2179 = vpop.f32.mrb[0].mxu0
        %2180 = vdwg.mxu0
        %2181 = vmatprep.subr.bf16.mxu0 %v1700
        %2182 = vmatpush1.bf16.msra.mxu0 %v1699
        %2183 = vmatprep.subr.bf16.mxu0 %v1705
        %2184 = vmatpush1.bf16.msra.mxu0 %v1704
        %2185 = vmatprep.subr.bf16.mxu0 %v1710
        %2186 = vmatpush1.bf16.msra.mxu0 %v1709
        %2187 = vmatprep.subr.bf16.mxu0 %v1715
        %2188 = vmatpush1.bf16.msra.mxu0 %v1714
        %2189 = vmatprep.subr.bf16.mxu0 %v1720
        %2190 = vmatpush1.bf16.msra.mxu0 %v1719
        %2191 = vmatprep.subr.bf16.mxu0 %v1725
        %2192 = vmatpush1.bf16.msra.mxu0 %v1724
        %2193 = vmatprep.subr.bf16.mxu0 %v1730
        %2194 = vmatpush1.bf16.msra.mxu0 %v1729
        %2195 = vmatprep.subr.bf16.mxu0 %v1735
        %2196 = vmatpush1.bf16.msra.mxu0 %v1734
        %2197 = vmatprep.subr.bf16.mxu0 %v1740
        %2198 = vmatpush1.bf16.msra.mxu0 %v1739
        %2199 = vmatprep.subr.bf16.mxu0 %v1745
        %2200 = vmatpush1.bf16.msra.mxu0 %v1744
        %2201 = vmatprep.subr.bf16.mxu0 %v1750
        %2202 = vmatpush1.bf16.msra.mxu0 %v1749
        %2203 = vmatprep.subr.bf16.mxu0 %v1755
        %2204 = vmatpush1.bf16.msra.mxu0 %v1754
        %2205 = vmatprep.subr.bf16.mxu0 %v1760
        %2206 = vmatpush1.bf16.msra.mxu0 %v1759
        %2207 = vmatprep.subr.bf16.mxu0 %v1765
        %2208 = vmatpush1.bf16.msra.mxu0 %v1764
        %2209 = vmatprep.subr.bf16.mxu0 %v1770
        %2210 = vmatpush1.bf16.msra.mxu0 %v1769
        %2211 = vmatprep.subr.bf16.mxu0 %v1775
        %2212 = vmatpush1.bf16.msra.mxu0 %v1774
        %2213 = vmatprep.mubr.bf16.mxu0 %v709
        %2214 = vmatmul.mubr.bf16.gmra.mrb[0].mxu0 %v708
        %v2215 = vpop.f32.mrb[0].mxu0
        %v2216 = vadd.f32 %v2175, %v2215
        %v2217 = vpop.f32.mrb[0].mxu0
        %v2218 = vadd.f32 %v2177, %v2217
        %v2219 = vpop.f32.mrb[0].mxu0
        %v2220 = vpop.f32.mrb[0].mxu0
        %2221 = vdwg.mxu0
        %2222 = vmatprep.subr.bf16.mxu0 %v1780
        %2223 = vmatpush1.bf16.msra.mxu0 %v1779
        %2224 = vmatprep.subr.bf16.mxu0 %v1785
        %2225 = vmatpush1.bf16.msra.mxu0 %v1784
        %2226 = vmatprep.subr.bf16.mxu0 %v1790
        %2227 = vmatpush1.bf16.msra.mxu0 %v1789
        %2228 = vmatprep.subr.bf16.mxu0 %v1795
        %2229 = vmatpush1.bf16.msra.mxu0 %v1794
        %2230 = vmatprep.subr.bf16.mxu0 %v1800
        %2231 = vmatpush1.bf16.msra.mxu0 %v1799
        %2232 = vmatprep.subr.bf16.mxu0 %v1805
        %2233 = vmatpush1.bf16.msra.mxu0 %v1804
        %2234 = vmatprep.subr.bf16.mxu0 %v1810
        %2235 = vmatpush1.bf16.msra.mxu0 %v1809
        %2236 = vmatprep.subr.bf16.mxu0 %v1815
        %2237 = vmatpush1.bf16.msra.mxu0 %v1814
        %2238 = vmatprep.subr.bf16.mxu0 0
        %2239 = vmatpush1.bf16.msra.mxu0 0
        %2240 = vmatprep.subr.bf16.mxu0 0
        %2241 = vmatpush1.bf16.msra.mxu0 0
        %2242 = vmatprep.subr.bf16.mxu0 0
        %2243 = vmatpush1.bf16.msra.mxu0 0
        %2244 = vmatprep.subr.bf16.mxu0 0
        %2245 = vmatpush1.bf16.msra.mxu0 0
        %2246 = vmatprep.subr.bf16.mxu0 0
        %2247 = vmatpush1.bf16.msra.mxu0 0
        %2248 = vmatprep.subr.bf16.mxu0 0
        %2249 = vmatpush1.bf16.msra.mxu0 0
        %2250 = vmatprep.subr.bf16.mxu0 0
        %2251 = vmatpush1.bf16.msra.mxu0 0
        %2252 = vmatprep.subr.bf16.mxu0 0
        %2253 = vmatpush1.bf16.msra.mxu0 0
        %2254 = vmatprep.mubr.bf16.mxu0 0
        %2255 = vmatmul.mubr.bf16.gmra.mrb[0].mxu0 %v710
        %v2256 = vpop.f32.mrb[0].mxu0
        %v2257 = vadd.f32 %v2216, %v2256
        %v2258 = vpop.f32.mrb[0].mxu0
        %v2259 = vadd.f32 %v2218, %v2258
        %v2260 = vpop.f32.mrb[0].mxu0
        %v2261 = vpop.f32.mrb[0].mxu0
        %2262 = vdwg.mxu0
        %2263 = vmatprep.subr.bf16.mxu0 0
        %2264 = vmatpush1.bf16.msra.mxu0 %v1621
        %2265 = vmatprep.subr.bf16.mxu0 0
        %2266 = vmatpush1.bf16.msra.mxu0 %v1626
        %2267 = vmatprep.subr.bf16.mxu0 0
        %2268 = vmatpush1.bf16.msra.mxu0 %v1631
        %2269 = vmatprep.subr.bf16.mxu0 0
        %2270 = vmatpush1.bf16.msra.mxu0 %v1636
        %2271 = vmatprep.subr.bf16.mxu0 0
        %2272 = vmatpush1.bf16.msra.mxu0 %v1641
        %2273 = vmatprep.subr.bf16.mxu0 0
        %2274 = vmatpush1.bf16.msra.mxu0 %v1646
        %2275 = vmatprep.subr.bf16.mxu0 0
        %2276 = vmatpush1.bf16.msra.mxu0 %v1651
        %2277 = vmatprep.subr.bf16.mxu0 0
        %2278 = vmatpush1.bf16.msra.mxu0 %v1656
        %2279 = vmatprep.subr.bf16.mxu0 0
        %2280 = vmatpush1.bf16.msra.mxu0 %v1661
        %2281 = vmatprep.subr.bf16.mxu0 0
        %2282 = vmatpush1.bf16.msra.mxu0 %v1666
        %2283 = vmatprep.subr.bf16.mxu0 0
        %2284 = vmatpush1.bf16.msra.mxu0 %v1671
        %2285 = vmatprep.subr.bf16.mxu0 0
        %2286 = vmatpush1.bf16.msra.mxu0 %v1676
        %2287 = vmatprep.subr.bf16.mxu0 0
        %2288 = vmatpush1.bf16.msra.mxu0 %v1681
        %2289 = vmatprep.subr.bf16.mxu0 0
        %2290 = vmatpush1.bf16.msra.mxu0 %v1686
        %2291 = vmatprep.subr.bf16.mxu0 0
        %2292 = vmatpush1.bf16.msra.mxu0 %v1691
        %2293 = vmatprep.subr.bf16.mxu0 0
        %2294 = vmatpush1.bf16.msra.mxu0 %v1696
        %2295 = vmatprep.mubr.bf16.mxu0 %v707
        %2296 = vmatmul.mubr.bf16.gmra.mrb[0].mxu0 %v706
        %v2297 = vpop.f32.mrb[0].mxu0
        %v2298 = vadd.f32 %v971, %v2297
        %v2299 = vpop.f32.mrb[0].mxu0
        %v2300 = vpop.f32.mrb[0].mxu0
        %v2301 = vpop.f32.mrb[0].mxu0
        %2302 = vdwg.mxu0
        %2303 = vmatprep.subr.bf16.mxu0 0
        %2304 = vmatpush1.bf16.msra.mxu0 %v1701
        %2305 = vmatprep.subr.bf16.mxu0 0
        %2306 = vmatpush1.bf16.msra.mxu0 %v1706
        %2307 = vmatprep.subr.bf16.mxu0 0
        %2308 = vmatpush1.bf16.msra.mxu0 %v1711
        %2309 = vmatprep.subr.bf16.mxu0 0
        %2310 = vmatpush1.bf16.msra.mxu0 %v1716
        %2311 = vmatprep.subr.bf16.mxu0 0
        %2312 = vmatpush1.bf16.msra.mxu0 %v1721
        %2313 = vmatprep.subr.bf16.mxu0 0
        %2314 = vmatpush1.bf16.msra.mxu0 %v1726
        %2315 = vmatprep.subr.bf16.mxu0 0
        %2316 = vmatpush1.bf16.msra.mxu0 %v1731
        %2317 = vmatprep.subr.bf16.mxu0 0
        %2318 = vmatpush1.bf16.msra.mxu0 %v1736
        %2319 = vmatprep.subr.bf16.mxu0 0
        %2320 = vmatpush1.bf16.msra.mxu0 %v1741
        %2321 = vmatprep.subr.bf16.mxu0 0
        %2322 = vmatpush1.bf16.msra.mxu0 %v1746
        %2323 = vmatprep.subr.bf16.mxu0 0
        %2324 = vmatpush1.bf16.msra.mxu0 %v1751
        %2325 = vmatprep.subr.bf16.mxu0 0
        %2326 = vmatpush1.bf16.msra.mxu0 %v1756
        %2327 = vmatprep.subr.bf16.mxu0 0
        %2328 = vmatpush1.bf16.msra.mxu0 %v1761
        %2329 = vmatprep.subr.bf16.mxu0 0
        %2330 = vmatpush1.bf16.msra.mxu0 %v1766
        %2331 = vmatprep.subr.bf16.mxu0 0
        %2332 = vmatpush1.bf16.msra.mxu0 %v1771
        %2333 = vmatprep.subr.bf16.mxu0 0
        %2334 = vmatpush1.bf16.msra.mxu0 %v1776
        %2335 = vmatprep.mubr.bf16.mxu0 %v709
        %2336 = vmatmul.mubr.bf16.gmra.mrb[0].mxu0 %v708
        %v2337 = vpop.f32.mrb[0].mxu0
        %v2338 = vadd.f32 %v2298, %v2337
        %v2339 = vpop.f32.mrb[0].mxu0
        %v2340 = vpop.f32.mrb[0].mxu0
        %v2341 = vpop.f32.mrb[0].mxu0
        %2342 = vdwg.mxu0
        %2343 = vmatprep.subr.bf16.mxu0 0
        %2344 = vmatpush1.bf16.msra.mxu0 %v1781
        %2345 = vmatprep.subr.bf16.mxu0 0
        %2346 = vmatpush1.bf16.msra.mxu0 %v1786
        %2347 = vmatprep.subr.bf16.mxu0 0
        %2348 = vmatpush1.bf16.msra.mxu0 %v1791
        %2349 = vmatprep.subr.bf16.mxu0 0
        %2350 = vmatpush1.bf16.msra.mxu0 %v1796
        %2351 = vmatprep.subr.bf16.mxu0 0
        %2352 = vmatpush1.bf16.msra.mxu0 %v1801
        %2353 = vmatprep.subr.bf16.mxu0 0
        %2354 = vmatpush1.bf16.msra.mxu0 %v1806
        %2355 = vmatprep.subr.bf16.mxu0 0
        %2356 = vmatpush1.bf16.msra.mxu0 %v1811
        %2357 = vmatprep.subr.bf16.mxu0 0
        %2358 = vmatpush1.bf16.msra.mxu0 %v1816
        %2359 = vmatprep.subr.bf16.mxu0 0
        %2360 = vmatpush1.bf16.msra.mxu0 0
        %2361 = vmatprep.subr.bf16.mxu0 0
        %2362 = vmatpush1.bf16.msra.mxu0 0
        %2363 = vmatprep.subr.bf16.mxu0 0
        %2364 = vmatpush1.bf16.msra.mxu0 0
        %2365 = vmatprep.subr.bf16.mxu0 0
        %2366 = vmatpush1.bf16.msra.mxu0 0
        %2367 = vmatprep.subr.bf16.mxu0 0
        %2368 = vmatpush1.bf16.msra.mxu0 0
        %2369 = vmatprep.subr.bf16.mxu0 0
        %2370 = vmatpush1.bf16.msra.mxu0 0
        %2371 = vmatprep.subr.bf16.mxu0 0
        %2372 = vmatpush1.bf16.msra.mxu0 0
        %2373 = vmatprep.subr.bf16.mxu0 0
        %2374 = vmatpush1.bf16.msra.mxu0 0
        %2375 = vmatprep.mubr.bf16.mxu0 0
        %2376 = vmatmul.mubr.bf16.gmra.mrb[0].mxu0 %v710
        %v2377 = vpop.f32.mrb[0].mxu0
        %v2378 = vadd.f32 %v2338, %v2377
        %v2379 = vpop.f32.mrb[0].mxu0
        %v2380 = vpop.f32.mrb[0].mxu0
        %v2381 = vpop.f32.mrb[0].mxu0
        %2382 = vdwg.mxu0
        %v2383 = vpack.c.bf16 %v2134, %v2134
        %v2384 = vpack.c.bf16 %v2136, %v2136
        %v2385 = vpack.c.bf16 %v2257, %v2257
        %v2386 = vpack.c.bf16 %v2259, %v2259
        %v2387 = vpack.c.bf16 %v2378, %v2378
        %v2388 = vld [vmem:[#allocation8] sm:$0xf]
        %v2389 = vld [vmem:[#allocation8 + $0x4] sm:$0xf]
        %v2390 = vld [vmem:[#allocation8 + $0x8] sm:$0xf]
        %v2391 = vld [vmem:[#allocation8 + $0xc] sm:$0xf]
        %v2392 = vld [vmem:[#allocation8 + $0x10] sm:$0xf]
        %v2393 = vld [vmem:[#allocation8 + $0x14] sm:$0xf]
        %v2394 = vld [vmem:[#allocation8 + $0x18] sm:$0xf]
        %v2395 = vld [vmem:[#allocation8 + $0x1c] sm:$0xf]
        %v2396 = vld [vmem:[#allocation8 + $0x20] sm:$0xf]
        %v2397 = vld [vmem:[#allocation8 + $0x24] sm:$0xf]
        %v2398 = vld [vmem:[#allocation8 + $0x28] sm:$0xf]
        %v2399 = vld [vmem:[#allocation8 + $0x2c] sm:$0xf]
        %v2400 = vld [vmem:[#allocation8 + $0x30] sm:$0xf]
        %v2401 = vld [vmem:[#allocation8 + $0x34] sm:$0xf]
        %v2402 = vld [vmem:[#allocation8 + $0x38] sm:$0xf]
        %v2403 = vld [vmem:[#allocation8 + $0x3c] sm:$0xf]
        %v2404 = vld [vmem:[#allocation8 + $0x40] sm:$0xf]
        %v2405 = vld [vmem:[#allocation8 + $0x44] sm:$0xf]
        %v2406 = vld [vmem:[#allocation8 + $0x48] sm:$0xf]
        %v2407 = vld [vmem:[#allocation8 + $0x4c] sm:$0xf]
        %v2408 = vld [vmem:[#allocation8 + $0x50] sm:$0xf]
        %v2409 = vld [vmem:[#allocation8 + $0x54] sm:$0xf]
        %v2410 = vld [vmem:[#allocation8 + $0x58] sm:$0xf]
        %v2411 = vld [vmem:[#allocation8 + $0x5c] sm:$0xf]
        %v2412 = vld [vmem:[#allocation8 + $0x60] sm:$0xf]
        %v2413 = vld [vmem:[#allocation8 + $0x64] sm:$0xf]
        %v2414 = vld [vmem:[#allocation8 + $0x68] sm:$0xf]
        %v2415 = vld [vmem:[#allocation8 + $0x6c] sm:$0xf]
        %v2416 = vld [vmem:[#allocation8 + $0x70] sm:$0xf]
        %v2417 = vld [vmem:[#allocation8 + $0x74] sm:$0xf]
        %v2418 = vld [vmem:[#allocation8 + $0x78] sm:$0xf]
        %v2419 = vld [vmem:[#allocation8 + $0x7c] sm:$0xf]
        %v2420 = vld [vmem:[#allocation8 + $0x80] sm:$0xf]
        %v2421 = vld [vmem:[#allocation8 + $0x84] sm:$0xf]
        %v2422 = vld [vmem:[#allocation8 + $0x88] sm:$0xf]
        %v2423 = vld [vmem:[#allocation8 + $0x8c] sm:$0xf]
        %v2424 = vld [vmem:[#allocation8 + $0x90] sm:$0xf]
        %v2425 = vld [vmem:[#allocation8 + $0x94] sm:$0xf]
        %v2426 = vld [vmem:[#allocation8 + $0x98] sm:$0xf]
        %v2427 = vld [vmem:[#allocation8 + $0x9c] sm:$0xf]
        %v2428 = vld [vmem:[#allocation8 + $0xa0] sm:$0xf]
        %v2429 = vld [vmem:[#allocation8 + $0xa4] sm:$0xf]
        %v2430 = vld [vmem:[#allocation8 + $0xa8] sm:$0xf]
        %v2431 = vld [vmem:[#allocation8 + $0xac] sm:$0xf]
        %v2432 = vld [vmem:[#allocation8 + $0xb0] sm:$0xf]
        %v2433 = vld [vmem:[#allocation8 + $0xb4] sm:$0xf]
        %v2434 = vld [vmem:[#allocation8 + $0xb8] sm:$0xf]
        %v2435 = vld [vmem:[#allocation8 + $0xbc] sm:$0xf]
        %v2436 = vld [vmem:[#allocation8 + $0xc0] sm:$0xf]
        %v2437 = vld [vmem:[#allocation8 + $0xc4] sm:$0xf]
        %v2438 = vld [vmem:[#allocation8 + $0xc8] sm:$0xf]
        %v2439 = vld [vmem:[#allocation8 + $0xcc] sm:$0xf]
        %v2440 = vld [vmem:[#allocation8 + $0xd0] sm:$0xf]
        %v2441 = vld [vmem:[#allocation8 + $0xd4] sm:$0xf]
        %v2442 = vld [vmem:[#allocation8 + $0xd8] sm:$0xf]
        %v2443 = vld [vmem:[#allocation8 + $0xdc] sm:$0xf]
        %v2444 = vld [vmem:[#allocation8 + $0xe0] sm:$0xf]
        %v2445 = vld [vmem:[#allocation8 + $0xe4] sm:$0xf]
        %v2446 = vld [vmem:[#allocation8 + $0xe8] sm:$0xf]
        %v2447 = vld [vmem:[#allocation8 + $0xec] sm:$0xf]
        %v2448 = vld [vmem:[#allocation8 + $0xf0] sm:$0xf]
        %v2449 = vld [vmem:[#allocation8 + $0xf4] sm:$0xf]
        %v2450 = vld [vmem:[#allocation8 + $0xf8] sm:$0xf]
        %v2451 = vld [vmem:[#allocation8 + $0xfc] sm:$0xf]
        %v2452 = vld [vmem:[#allocation8 + $0x100] sm:$0xf]
        %v2453 = vld [vmem:[#allocation8 + $0x104] sm:$0xf]
        %v2454 = vld [vmem:[#allocation8 + $0x108] sm:$0xf]
        %v2455 = vld [vmem:[#allocation8 + $0x10c] sm:$0xf]
        %v2456 = vld [vmem:[#allocation8 + $0x110] sm:$0xf]
        %v2457 = vld [vmem:[#allocation8 + $0x114] sm:$0xf]
        %v2458 = vld [vmem:[#allocation8 + $0x118] sm:$0xf]
        %v2459 = vld [vmem:[#allocation8 + $0x11c] sm:$0xf]
        %v2460 = vld [vmem:[#allocation8 + $0x120] sm:$0xf]
        %v2461 = vld [vmem:[#allocation8 + $0x124] sm:$0xf]
        %v2462 = vld [vmem:[#allocation8 + $0x128] sm:$0xf]
        %v2463 = vld [vmem:[#allocation8 + $0x12c] sm:$0xf]
        %v2464 = vld [vmem:[#allocation8 + $0x130] sm:$0xf]
        %v2465 = vld [vmem:[#allocation8 + $0x134] sm:$0xf]
        %v2466 = vld [vmem:[#allocation8 + $0x138] sm:$0xf]
        %v2467 = vld [vmem:[#allocation8 + $0x13c] sm:$0xf]
        %v2469 = vlaneseq
        %v2470 = vshrl.u32 %v2469, 7
        %v2471 = vsub.s32 0, %v2470
        %v2472 = vrot.slane %v299, %v2471
        %v2554 = vunpack.c.l.b16 %v2388
        %v2555 = vunpack.c.l.b16 %v2389
        %v2556 = vunpack.c.l.b16 %v2390
        %v2557 = vunpack.c.l.b16 %v2391
        %v2558 = vunpack.c.l.b16 %v2392
        %v2559 = vunpack.c.l.b16 %v2393
        %v2560 = vunpack.c.l.b16 %v2394
        %v2561 = vunpack.c.l.b16 %v2395
        %v2562 = vunpack.c.l.b16 %v2396
        %v2563 = vunpack.c.l.b16 %v2397
        %v2564 = vunpack.c.l.b16 %v2398
        %v2565 = vunpack.c.l.b16 %v2399
        %v2566 = vunpack.c.l.b16 %v2400
        %v2567 = vunpack.c.l.b16 %v2401
        %v2568 = vunpack.c.l.b16 %v2402
        %v2569 = vunpack.c.l.b16 %v2403
        %v2570 = vunpack.c.l.b16 %v2404
        %v2571 = vunpack.c.l.b16 %v2405
        %v2572 = vunpack.c.l.b16 %v2406
        %v2573 = vunpack.c.l.b16 %v2407
        %v2574 = vunpack.c.l.b16 %v2408
        %v2575 = vunpack.c.l.b16 %v2409
        %v2576 = vunpack.c.l.b16 %v2410
        %v2577 = vunpack.c.l.b16 %v2411
        %v2578 = vunpack.c.l.b16 %v2412
        %v2579 = vunpack.c.l.b16 %v2413
        %v2580 = vunpack.c.l.b16 %v2414
        %v2581 = vunpack.c.l.b16 %v2415
        %v2582 = vunpack.c.l.b16 %v2416
        %v2583 = vunpack.c.l.b16 %v2417
        %v2584 = vunpack.c.l.b16 %v2418
        %v2585 = vunpack.c.l.b16 %v2419
        %v2586 = vunpack.c.l.b16 %v2420
        %v2587 = vunpack.c.l.b16 %v2421
        %v2588 = vunpack.c.l.b16 %v2422
        %v2589 = vunpack.c.l.b16 %v2423
        %v2590 = vunpack.c.l.b16 %v2424
        %v2591 = vunpack.c.l.b16 %v2425
        %v2592 = vunpack.c.l.b16 %v2426
        %v2593 = vunpack.c.l.b16 %v2427
        %v2594 = vunpack.c.l.b16 %v2428
        %v2595 = vunpack.c.l.b16 %v2429
        %v2596 = vunpack.c.l.b16 %v2430
        %v2597 = vunpack.c.l.b16 %v2431
        %v2598 = vunpack.c.l.b16 %v2432
        %v2599 = vunpack.c.l.b16 %v2433
        %v2600 = vunpack.c.l.b16 %v2434
        %v2601 = vunpack.c.l.b16 %v2435
        %v2602 = vunpack.c.l.b16 %v2436
        %v2603 = vunpack.c.l.b16 %v2437
        %v2604 = vunpack.c.l.b16 %v2438
        %v2605 = vunpack.c.l.b16 %v2439
        %v2606 = vunpack.c.l.b16 %v2440
        %v2607 = vunpack.c.l.b16 %v2441
        %v2608 = vunpack.c.l.b16 %v2442
        %v2609 = vunpack.c.l.b16 %v2443
        %v2610 = vunpack.c.l.b16 %v2444
        %v2611 = vunpack.c.l.b16 %v2445
        %v2612 = vunpack.c.l.b16 %v2446
        %v2613 = vunpack.c.l.b16 %v2447
        %v2614 = vunpack.c.l.b16 %v2448
        %v2615 = vunpack.c.l.b16 %v2449
        %v2616 = vunpack.c.l.b16 %v2450
        %v2617 = vunpack.c.l.b16 %v2451
        %v2618 = vunpack.c.l.b16 %v2452
        %v2619 = vunpack.c.l.b16 %v2453
        %v2620 = vunpack.c.l.b16 %v2454
        %v2621 = vunpack.c.l.b16 %v2455
        %v2622 = vunpack.c.l.b16 %v2456
        %v2623 = vunpack.c.l.b16 %v2457
        %v2624 = vunpack.c.l.b16 %v2458
        %v2625 = vunpack.c.l.b16 %v2459
        %v2626 = vunpack.c.l.b16 %v2460
        %v2627 = vunpack.c.l.b16 %v2461
        %v2628 = vunpack.c.l.b16 %v2462
        %v2629 = vunpack.c.l.b16 %v2463
        %v2630 = vunpack.c.l.b16 %v2464
        %v2631 = vunpack.c.l.b16 %v2465
        %v2632 = vunpack.c.l.b16 %v2466
        %v2633 = vunpack.c.l.b16 %v2467
        %v2634 = vpack.c.b16 %v2555, %v2554
        %v2635 = vpack.c.b16 %v2557, %v2556
        %v2636 = vpack.c.b16 %v2559, %v2558
        %v2637 = vpack.c.b16 %v2561, %v2560
        %v2638 = vpack.c.b16 %v2563, %v2562
        %v2639 = vpack.c.b16 %v2565, %v2564
        %v2640 = vpack.c.b16 %v2567, %v2566
        %v2641 = vpack.c.b16 %v2569, %v2568
        %v2642 = vpack.c.b16 %v2571, %v2570
        %v2643 = vpack.c.b16 %v2573, %v2572
        %v2644 = vpack.c.b16 %v2575, %v2574
        %v2645 = vpack.c.b16 %v2577, %v2576
        %v2646 = vpack.c.b16 %v2579, %v2578
        %v2647 = vpack.c.b16 %v2581, %v2580
        %v2648 = vpack.c.b16 %v2583, %v2582
        %v2649 = vpack.c.b16 %v2585, %v2584
        %v2650 = vpack.c.b16 %v2587, %v2586
        %v2651 = vpack.c.b16 %v2589, %v2588
        %v2652 = vpack.c.b16 %v2591, %v2590
        %v2653 = vpack.c.b16 %v2593, %v2592
        %v2654 = vpack.c.b16 %v2595, %v2594
        %v2655 = vpack.c.b16 %v2597, %v2596
        %v2656 = vpack.c.b16 %v2599, %v2598
        %v2657 = vpack.c.b16 %v2601, %v2600
        %v2658 = vpack.c.b16 %v2603, %v2602
        %v2659 = vpack.c.b16 %v2605, %v2604
        %v2660 = vpack.c.b16 %v2607, %v2606
        %v2661 = vpack.c.b16 %v2609, %v2608
        %v2662 = vpack.c.b16 %v2611, %v2610
        %v2663 = vpack.c.b16 %v2613, %v2612
        %v2664 = vpack.c.b16 %v2615, %v2614
        %v2665 = vpack.c.b16 %v2617, %v2616
        %v2666 = vpack.c.b16 %v2619, %v2618
        %v2667 = vpack.c.b16 %v2621, %v2620
        %v2668 = vpack.c.b16 %v2623, %v2622
        %v2669 = vpack.c.b16 %v2625, %v2624
        %v2670 = vpack.c.b16 %v2627, %v2626
        %v2671 = vpack.c.b16 %v2629, %v2628
        %v2672 = vpack.c.b16 %v2631, %v2630
        %v2673 = vpack.c.b16 %v2633, %v2632
        %2714 = vmatprep.subr.bf16.mxu0 0
        %2715 = vmatpush1.bf16.msra.mxu0 %v2634
        %2716 = vmatprep.subr.bf16.mxu0 0
        %2717 = vmatpush1.bf16.msra.mxu0 %v2635
        %2718 = vmatprep.subr.bf16.mxu0 0
        %2719 = vmatpush1.bf16.msra.mxu0 %v2636
        %2720 = vmatprep.subr.bf16.mxu0 0
        %2721 = vmatpush1.bf16.msra.mxu0 %v2637
        %2722 = vmatprep.subr.bf16.mxu0 0
        %2723 = vmatpush1.bf16.msra.mxu0 %v2638
        %2724 = vmatprep.subr.bf16.mxu0 0
        %2725 = vmatpush1.bf16.msra.mxu0 %v2639
        %2726 = vmatprep.subr.bf16.mxu0 0
        %2727 = vmatpush1.bf16.msra.mxu0 %v2640
        %2728 = vmatprep.subr.bf16.mxu0 0
        %2729 = vmatpush1.bf16.msra.mxu0 %v2641
        %2730 = vmatprep.subr.bf16.mxu0 0
        %2731 = vmatpush1.bf16.msra.mxu0 %v2642
        %2732 = vmatprep.subr.bf16.mxu0 0
        %2733 = vmatpush1.bf16.msra.mxu0 %v2643
        %2734 = vmatprep.subr.bf16.mxu0 0
        %2735 = vmatpush1.bf16.msra.mxu0 %v2644
        %2736 = vmatprep.subr.bf16.mxu0 0
        %2737 = vmatpush1.bf16.msra.mxu0 %v2645
        %2738 = vmatprep.subr.bf16.mxu0 0
        %2739 = vmatpush1.bf16.msra.mxu0 %v2646
        %2740 = vmatprep.subr.bf16.mxu0 0
        %2741 = vmatpush1.bf16.msra.mxu0 %v2647
        %2742 = vmatprep.subr.bf16.mxu0 0
        %2743 = vmatpush1.bf16.msra.mxu0 %v2648
        %2744 = vmatprep.subr.bf16.mxu0 0
        %2745 = vmatpush1.bf16.msra.mxu0 %v2649
        %2746 = vmatprep.mubr.bf16.mxu0 %v2384
        %2747 = vmatmul.mubr.bf16.gmra.mrb[0].mxu0 %v2383
        %v2748 = vpop.f32.mrb[0].mxu0
        %v2749 = vadd.f32 %v2472, %v2748
        %v2750 = vpop.f32.mrb[0].mxu0
        %v2751 = vpop.f32.mrb[0].mxu0
        %v2752 = vpop.f32.mrb[0].mxu0
        %2753 = vdwg.mxu0
        %2754 = vmatprep.subr.bf16.mxu0 0
        %2755 = vmatpush1.bf16.msra.mxu0 %v2650
        %2756 = vmatprep.subr.bf16.mxu0 0
        %2757 = vmatpush1.bf16.msra.mxu0 %v2651
        %2758 = vmatprep.subr.bf16.mxu0 0
        %2759 = vmatpush1.bf16.msra.mxu0 %v2652
        %2760 = vmatprep.subr.bf16.mxu0 0
        %2761 = vmatpush1.bf16.msra.mxu0 %v2653
        %2762 = vmatprep.subr.bf16.mxu0 0
        %2763 = vmatpush1.bf16.msra.mxu0 %v2654
        %2764 = vmatprep.subr.bf16.mxu0 0
        %2765 = vmatpush1.bf16.msra.mxu0 %v2655
        %2766 = vmatprep.subr.bf16.mxu0 0
        %2767 = vmatpush1.bf16.msra.mxu0 %v2656
        %2768 = vmatprep.subr.bf16.mxu0 0
        %2769 = vmatpush1.bf16.msra.mxu0 %v2657
        %2770 = vmatprep.subr.bf16.mxu0 0
        %2771 = vmatpush1.bf16.msra.mxu0 %v2658
        %2772 = vmatprep.subr.bf16.mxu0 0
        %2773 = vmatpush1.bf16.msra.mxu0 %v2659
        %2774 = vmatprep.subr.bf16.mxu0 0
        %2775 = vmatpush1.bf16.msra.mxu0 %v2660
        %2776 = vmatprep.subr.bf16.mxu0 0
        %2777 = vmatpush1.bf16.msra.mxu0 %v2661
        %2778 = vmatprep.subr.bf16.mxu0 0
        %2779 = vmatpush1.bf16.msra.mxu0 %v2662
        %2780 = vmatprep.subr.bf16.mxu0 0
        %2781 = vmatpush1.bf16.msra.mxu0 %v2663
        %2782 = vmatprep.subr.bf16.mxu0 0
        %2783 = vmatpush1.bf16.msra.mxu0 %v2664
        %2784 = vmatprep.subr.bf16.mxu0 0
        %2785 = vmatpush1.bf16.msra.mxu0 %v2665
        %2786 = vmatprep.mubr.bf16.mxu0 %v2386
        %2787 = vmatmul.mubr.bf16.gmra.mrb[0].mxu0 %v2385
        %v2788 = vpop.f32.mrb[0].mxu0
        %v2789 = vadd.f32 %v2749, %v2788
        %v2790 = vpop.f32.mrb[0].mxu0
        %v2791 = vpop.f32.mrb[0].mxu0
        %v2792 = vpop.f32.mrb[0].mxu0
        %2793 = vdwg.mxu0
        %2794 = vmatprep.subr.bf16.mxu0 0
        %2795 = vmatpush1.bf16.msra.mxu0 %v2666
        %2796 = vmatprep.subr.bf16.mxu0 0
        %2797 = vmatpush1.bf16.msra.mxu0 %v2667
        %2798 = vmatprep.subr.bf16.mxu0 0
        %2799 = vmatpush1.bf16.msra.mxu0 %v2668
        %2800 = vmatprep.subr.bf16.mxu0 0
        %2801 = vmatpush1.bf16.msra.mxu0 %v2669
        %2802 = vmatprep.subr.bf16.mxu0 0
        %2803 = vmatpush1.bf16.msra.mxu0 %v2670
        %2804 = vmatprep.subr.bf16.mxu0 0
        %2805 = vmatpush1.bf16.msra.mxu0 %v2671
        %2806 = vmatprep.subr.bf16.mxu0 0
        %2807 = vmatpush1.bf16.msra.mxu0 %v2672
        %2808 = vmatprep.subr.bf16.mxu0 0
        %2809 = vmatpush1.bf16.msra.mxu0 %v2673
        %2810 = vmatprep.subr.bf16.mxu0 0
        %2811 = vmatpush1.bf16.msra.mxu0 0
        %2812 = vmatprep.subr.bf16.mxu0 0
        %2813 = vmatpush1.bf16.msra.mxu0 0
        %2814 = vmatprep.subr.bf16.mxu0 0
        %2815 = vmatpush1.bf16.msra.mxu0 0
        %2816 = vmatprep.subr.bf16.mxu0 0
        %2817 = vmatpush1.bf16.msra.mxu0 0
        %2818 = vmatprep.subr.bf16.mxu0 0
        %2819 = vmatpush1.bf16.msra.mxu0 0
        %2820 = vmatprep.subr.bf16.mxu0 0
        %2821 = vmatpush1.bf16.msra.mxu0 0
        %2822 = vmatprep.subr.bf16.mxu0 0
        %2823 = vmatpush1.bf16.msra.mxu0 0
        %2824 = vmatprep.subr.bf16.mxu0 0
        %2825 = vmatpush1.bf16.msra.mxu0 0
        %2826 = vmatprep.mubr.bf16.mxu0 0
        %2827 = vmatmul.mubr.bf16.gmra.mrb[0].mxu0 %v2387
        %v2828 = vpop.f32.mrb[0].mxu0
        %v2829 = vadd.f32 %v2789, %v2828
        %v2830 = vpop.f32.mrb[0].mxu0
        %v2831 = vpop.f32.mrb[0].mxu0
        %v2832 = vpop.f32.mrb[0].mxu0
        %2833 = vdwg.mxu0
        %2834 = vst [vmem:[%s295] sm:$0xff] %v2829
        %s2835 = sand.u32 %s142, 1
        %s2836 = scalar_lea.sflag [#allocation4], %s2835
        %s2837 = sand.u32 %s142, 1
        %s2838 = smul.addr %s2837, 8
        %s2839 = scalar_lea.vmem [#allocation11], %s2838
        // Predicated region
        $region61: #{gan_instance_forward.1} parent=39 // pred_check
          %p2840 = pneg %p152
        $region62: #{gan_instance_forward.1} parent=39 // pred_check_branch
          %2842 = sbr.rel (%p2840) target = $region64
        $region63: #{gan_instance_forward.1} parent=39 // pred_region
          %s2844 = ssub.s32 128, 128
          %2845 = vsyncadd %s2836, %s2844
          %s2846 = smul.addr %s24, 128
          %s2847 = scalar_lea.hbm %s5, %s2846
          %s2849 = sshll.u32 %s2839, 4
          %s2850 = int_to_ptr.vmem [resolvable:$true] %s2849
          %2852 = dma.vmem_to_hbm [thread:$0]  %s2850, 128, %s2847, %s2836
        $region64: #{gan_instance_forward.1} parent=39 // pred_fallthru
          _
      $region40: #{gan_instance_forward.1} parent=5 // pred_fallthru
        _
      %p2853 = scmp.le.s32.totalorder 2, %s19
      // Predicated region
      $region65: #{gan_instance_forward.1} parent=5 // pred_check
        %p2854 = pneg %p2853
      $region66: #{gan_instance_forward.1} parent=5 // pred_check_branch
        %2856 = sbr.rel (%p2854) target = $region68
      $region67: #{gan_instance_forward.1} parent=5 // pred_region
        %s2857 = ssub.s32 %s19, 2
        // Predicated region
        $region69: #{gan_instance_forward.1} parent=67 // pred_check
          %p2858 = pneg %p158
        $region70: #{gan_instance_forward.1} parent=67 // pred_check_branch
          %2860 = sbr.rel (%p2858) target = $region72
        $region71: #{gan_instance_forward.1} parent=67 // pred_region
          %s2861 = sand.u32 %s143, 1
          %s2862 = scalar_lea.sflag [#allocation4], %s2861
          %s2863 = sand.u32 %s143, 1
          %s2864 = smul.addr %s2863, 8
          %s2865 = scalar_lea.vmem [#allocation11], %s2864
          %2866 = dma.done %s2862, 128
        $region72: #{gan_instance_forward.1} parent=67 // pred_fallthru
          _
      $region68: #{gan_instance_forward.1} parent=5 // pred_fallthru
        _
    $region6: #{gan_instance_forward.1} parent=1 // loop_footer
      %s23 = sadd.s32 1, %s19
    $region7: #{gan_instance_forward.1} parent=1 // loop_footer_branch
      %18 = sbr.rel target = $region3
    $region8: #{gan_instance_forward.1} parent=1 // loop_exit
      _
    %2867 = vsyncpa [#allocation3], 1
    %s2868 = scalar_lea.sflag [#allocation3], 1
    %2869 = vsyncpa %s2868, 1
    %2870 = vsyncpa [#allocation6], 1
    %2871 = vsyncpa [#allocation9], 1
    %2872 = vsyncpa [#allocation4], 1
    %s2873 = scalar_lea.sflag [#allocation4], 1
    %2874 = vsyncpa %s2873, 1

</llo_original>
